<compile_context>
chip_gen: v5e
topology: v5e:2x2
jax: 0.10.0
libtpu: 0.0.40
codegen_flags: <defaults>
</compile_context>

<pallas_src>
import functools

import jax
import jax.numpy as jnp
from jax import lax
from jax.experimental import pallas as pl
from jax.experimental.pallas import tpu as pltpu


_NEG = -1e30


def _round_up(x, m):
    return ((x + m - 1) // m) * m


# ---------------------------------------------------------------------------
# Preprocessing kernel: out = (F.normalize(x, dim=-1) * scale).astype(bf16)
# Row-tiled; `scale` is a (1, 1) f32 block (1/T for image feats, 1 for text).
# ---------------------------------------------------------------------------
def _normalize_scale_kernel(x_ref, scale_ref, o_ref):
    x = x_ref[...].astype(jnp.float32)
    inv_norm = lax.rsqrt(jnp.maximum(jnp.sum(x * x, axis=-1, keepdims=True),
                                     1e-24))
    o_ref[...] = (x * (inv_norm * scale_ref[...])).astype(o_ref.dtype)


def _normalize_rows(x, scale_11, rows_padded, row_tile,
                    out_dtype=jnp.bfloat16):
    n, d = x.shape
    if rows_padded != n:
        x = jnp.pad(x, ((0, rows_padded - n), (0, 0)))
    grid = (rows_padded // row_tile,)
    return pl.pallas_call(
        _normalize_scale_kernel,
        out_shape=jax.ShapeDtypeStruct((rows_padded, d), out_dtype),
        grid_spec=pltpu.PrefetchScalarGridSpec(
            num_scalar_prefetch=0,
            grid=grid,
            in_specs=[
                pl.BlockSpec((row_tile, d), lambda r: (r, 0)),
                pl.BlockSpec((1, 1), lambda r: (0, 0)),
            ],
            out_specs=pl.BlockSpec((row_tile, d), lambda r: (r, 0)),
        ),
        compiler_params=pltpu.CompilerParams(
            dimension_semantics=("parallel",)),
        cost_estimate=pl.CostEstimate(
            flops=4 * rows_padded * d,
            transcendentals=rows_padded,
            bytes_accessed=(4 + 2) * rows_padded * d),
    )(x, scale_11)


# ---------------------------------------------------------------------------
# Fused kernel: normalized-similarity matmul (x = (img_n / T) @ txt_n.T) plus
# online-softmax label-smoothed cross entropy with implicit diagonal targets,
# simultaneously row-wise (i2t) and column-wise (t2i, == transpose direction).
#
# grid = (nI, nJ), i outer / j inner (sequential).
#   row stats (tm, 1)   : reset at j == 0, finalized at j == nJ-1.
#   col stats (nJ,1,tn) : reset at i == 0, finalized at i == nI-1 (by then all
#                         row blocks for column block j have been visited).
# Loss sums accumulate into resident (1, 1) output blocks.
# ---------------------------------------------------------------------------
def _fused_infonce_kernel(a_ref, b_ref, li2t_ref, lt2i_ref,
                          m_row, l_row, s_row, d_row,
                          m_col, l_col, s_col, d_col, *,
                          n_rows, n_cols, label_smoothing,
                          mask_rows, mask_cols):
    i = pl.program_id(0)
    j = pl.program_id(1)
    n_i = pl.num_programs(0)
    n_j = pl.num_programs(1)
    tm = a_ref.shape[0]
    tn = b_ref.shape[0]
    ls = float(label_smoothing)

    @pl.when(jnp.logical_and(i == 0, j == 0))
    def _():
        li2t_ref[...] = jnp.zeros_like(li2t_ref)
        lt2i_ref[...] = jnp.zeros_like(lt2i_ref)

    @pl.when(j == 0)
    def _():
        m_row[...] = jnp.full_like(m_row, _NEG)
        l_row[...] = jnp.zeros_like(l_row)
        s_row[...] = jnp.zeros_like(s_row)
        d_row[...] = jnp.zeros_like(d_row)

    @pl.when(i == 0)
    def _():
        zeros = jnp.zeros((1, tn), jnp.float32)
        m_col[j] = jnp.full((1, tn), _NEG, jnp.float32)
        l_col[j] = zeros
        s_col[j] = zeros
        d_col[j] = zeros

    # x = (normalize(image)/T) @ normalize(text).T  -- bf16 operands, f32 acc.
    x = lax.dot_general(
        a_ref[...], b_ref[...],
        dimension_numbers=(((1,), (1,)), ((), ())),
        preferred_element_type=jnp.float32)

    rows_g = lax.broadcasted_iota(jnp.int32, (tm, 1), 0) + i * tm
    cols_g = lax.broadcasted_iota(jnp.int32, (1, tn), 1) + j * tn
    # world_size == 1 / rank == 0 -> targets are the main diagonal for both
    # directions (padded diagonal entries are exactly 0 and masked later).
    diag = rows_g == cols_g
    x_diag = jnp.where(diag, x, 0.0)

    # ---- i2t: online softmax over columns (classes = texts) -------------
    xc = jnp.where(cols_g < n_cols, x, _NEG) if mask_cols else x
    m_new = jnp.maximum(m_row[...], jnp.max(xc, axis=1, keepdims=True))
    l_row[...] = (jnp.exp(m_row[...] - m_new) * l_row[...]
                  + jnp.sum(jnp.exp(xc - m_new), axis=1, keepdims=True))
    m_row[...] = m_new
    d_row[...] += jnp.sum(x_diag, axis=1, keepdims=True)
    if ls != 0.0:
        xs = jnp.where(cols_g < n_cols, x, 0.0) if mask_cols else x
        s_row[...] += jnp.sum(xs, axis=1, keepdims=True)

    # ---- t2i: online softmax over rows (classes = images) ---------------
    xr = jnp.where(rows_g < n_rows, x, _NEG) if mask_rows else x
    mc_new = jnp.maximum(m_col[j], jnp.max(xr, axis=0, keepdims=True))
    l_col[j] = (jnp.exp(m_col[j] - mc_new) * l_col[j]
                + jnp.sum(jnp.exp(xr - mc_new), axis=0, keepdims=True))
    m_col[j] = mc_new
    d_col[j] = d_col[j] + jnp.sum(x_diag, axis=0, keepdims=True)
    if ls != 0.0:
        xt = jnp.where(rows_g < n_rows, x, 0.0) if mask_rows else x
        s_col[j] = s_col[j] + jnp.sum(xt, axis=0, keepdims=True)

    # ---- finalize i2t rows (row block i complete) ------------------------
    @pl.when(j == n_j - 1)
    def _():
        lse = m_row[...] + jnp.log(l_row[...])
        # CE w/ label smoothing: loss = lse - (1-ls)*logit[t] - (ls/C)*sum(x)
        per_row = lse - (1.0 - ls) * d_row[...]
        if ls != 0.0:
            per_row = per_row - (ls / n_cols) * s_row[...]
        if mask_rows:
            per_row = jnp.where(rows_g < n_rows, per_row, 0.0)
        li2t_ref[...] += jnp.sum(per_row, axis=0, keepdims=True)

    # ---- finalize t2i columns (column block j complete) ------------------
    @pl.when(i == n_i - 1)
    def _():
        lse_c = m_col[j] + jnp.log(l_col[j])
        per_col = lse_c - (1.0 - ls) * d_col[j]
        if ls != 0.0:
            per_col = per_col - (ls / n_rows) * s_col[j]
        if mask_cols:
            per_col = jnp.where(cols_g < n_cols, per_col, 0.0)
        lt2i_ref[...] += jnp.sum(per_col, axis=1, keepdims=True)


def _fused_infonce_sums(a_scaled_n, b_n, *, n_rows, n_cols, label_smoothing,
                        tm, tn):
    Mp, D = a_scaled_n.shape
    Np, _ = b_n.shape
    n_i = Mp // tm
    n_j = Np // tn

    kernel = functools.partial(
        _fused_infonce_kernel,
        n_rows=n_rows, n_cols=n_cols,
        label_smoothing=float(label_smoothing),
        mask_rows=(Mp != n_rows), mask_cols=(Np != n_cols))

    li2t, lt2i = pl.pallas_call(
        kernel,
        out_shape=(jax.ShapeDtypeStruct((1, 1), jnp.float32),
                   jax.ShapeDtypeStruct((1, 1), jnp.float32)),
        grid_spec=pltpu.PrefetchScalarGridSpec(
            num_scalar_prefetch=0,
            grid=(n_i, n_j),
            in_specs=[
                pl.BlockSpec((tm, D), lambda i, j: (i, 0)),
                pl.BlockSpec((tn, D), lambda i, j: (j, 0)),
            ],
            out_specs=(
                pl.BlockSpec((1, 1), lambda i, j: (0, 0)),
                pl.BlockSpec((1, 1), lambda i, j: (0, 0)),
            ),
            scratch_shapes=[
                pltpu.VMEM((tm, 1), jnp.float32),      # m_row
                pltpu.VMEM((tm, 1), jnp.float32),      # l_row
                pltpu.VMEM((tm, 1), jnp.float32),      # s_row
                pltpu.VMEM((tm, 1), jnp.float32),      # d_row
                pltpu.VMEM((n_j, 1, tn), jnp.float32),  # m_col
                pltpu.VMEM((n_j, 1, tn), jnp.float32),  # l_col
                pltpu.VMEM((n_j, 1, tn), jnp.float32),  # s_col
                pltpu.VMEM((n_j, 1, tn), jnp.float32),  # d_col
            ]),
        compiler_params=pltpu.CompilerParams(
            dimension_semantics=("arbitrary", "arbitrary")),
        cost_estimate=pl.CostEstimate(
            flops=2 * Mp * Np * D + 30 * Mp * Np,
            transcendentals=2 * Mp * Np,
            bytes_accessed=2 * (Mp * D + n_i * Np * D) + 8),
    )(a_scaled_n, b_n)
    return li2t[0, 0], lt2i[0, 0]


# ---------------------------------------------------------------------------
# Standalone similarity kernel (only used when return_similarity=True):
# sim[i, j] = <normalize(a[i]), normalize(b[j])>, bf16 MXU operands, f32 out.
# ---------------------------------------------------------------------------
def _sim_kernel(a_ref, b_ref, o_ref):
    a = a_ref[...].astype(jnp.float32)
    b = b_ref[...].astype(jnp.float32)
    a_n = (a * lax.rsqrt(jnp.maximum(jnp.sum(a * a, axis=-1, keepdims=True),
                                     1e-24))).astype(jnp.bfloat16)
    b_n = (b * lax.rsqrt(jnp.maximum(jnp.sum(b * b, axis=-1, keepdims=True),
                                     1e-24))).astype(jnp.bfloat16)
    o_ref[...] = lax.dot_general(
        a_n, b_n, dimension_numbers=(((1,), (1,)), ((), ())),
        preferred_element_type=jnp.float32)


def _normalized_similarity(a, b, budget_bytes=12 << 20):
    M, D = a.shape
    N, _ = b.shape
    tm = min(256, _round_up(M, 8))
    tn = min(256, _round_up(N, 128))
    while 8 * (tm + tn) * D + 8 * tm * tn > budget_bytes:
        if tm >= tn and tm > 8:
            tm = max(8, _round_up(tm // 2, 8))
        elif tn > 128:
            tn = max(128, _round_up(tn // 2, 128))
        else:
            break
    Mp, Np = _round_up(M, tm), _round_up(N, tn)
    if Mp != M:
        a = jnp.pad(a, ((0, Mp - M), (0, 0)))
    if Np != N:
        b = jnp.pad(b, ((0, Np - N), (0, 0)))
    grid = (Mp // tm, Np // tn)
    sim = pl.pallas_call(
        _sim_kernel,
        out_shape=jax.ShapeDtypeStruct((Mp, Np), jnp.float32),
        grid_spec=pltpu.PrefetchScalarGridSpec(
            num_scalar_prefetch=0,
            grid=grid,
            in_specs=[pl.BlockSpec((tm, D), lambda i, j: (i, 0)),
                      pl.BlockSpec((tn, D), lambda i, j: (j, 0))],
            out_specs=pl.BlockSpec((tm, tn), lambda i, j: (i, j))),
        compiler_params=pltpu.CompilerParams(
            dimension_semantics=("parallel", "parallel")),
        cost_estimate=pl.CostEstimate(
            flops=2 * Mp * Np * D,
            transcendentals=Mp * grid[1] + Np * grid[0],
            bytes_accessed=4 * (Mp * D + Np * D * grid[0] + Mp * Np)),
    )(a, b)
    return sim, M, N


# ---------------------------------------------------------------------------
# Tile selection for the fused kernel: biggest lane-dense tiles that keep the
# double-buffered bf16 inputs + f32 temporaries + preprocessing blocks inside
# a ~12 MiB budget (fits the default scoped-VMEM limit on v5e/v6e/v7x).
# ---------------------------------------------------------------------------
def _pick_tiles(M, N, D, tile_m=None, tile_n=None, budget_bytes=12 << 20):
    tm = tile_m if tile_m is not None else min(512, _round_up(M, 8))
    tn = tile_n if tile_n is not None else min(512, _round_up(N, 128))
    assert tm % 8 == 0 and tn % 128 == 0

    def est(tm_, tn_):
        fused = 2 * 2 * (tm_ + tn_) * D + 6 * tm_ * tn_ * 4
        preproc = (2 * 4 + 2 * 2) * max(tm_, tn_) * D
        return max(fused, preproc)

    if tile_m is None and tile_n is None:
        while est(tm, tn) > budget_bytes:
            if tm >= tn and tm > 8:
                tm = max(8, _round_up(tm // 2, 8))
            elif tn > 128:
                tn = max(128, _round_up(tn // 2, 128))
            else:
                break
    Mp = _round_up(M, tm)
    Np = _round_up(N, tn)
    return tm, tn, Mp, Np


@functools.partial(jax.jit, static_argnames=(
    "label_smoothing", "rank", "world_size", "return_similarity",
    "tile_m", "tile_n"))
def infonce_loss_forward(image_feats, text_feats, temperature, *,
                         label_smoothing=0.0, rank=0, world_size=1,
                         return_similarity=False, tile_m=None, tile_n=None):
    """Pallas equivalent of InfoNCELoss.forward (single-device path)."""
    assert world_size == 1 and rank == 0, "single-device path only"
    assert image_feats.ndim == 2 and text_feats.ndim == 2
    M, D = image_feats.shape
    N, D2 = text_feats.shape
    assert D == D2
    assert M == N, "diagonal InfoNCE targets require equal batch sizes"

    tm, tn, Mp, Np = _pick_tiles(M, N, D, tile_m, tile_n)

    inv_t = (1.0 / jnp.asarray(temperature, jnp.float32)).reshape(1, 1)
    one = jnp.ones((1, 1), jnp.float32)

    # Normalize (+ fold 1/T into the image rows), cast to bf16 for the MXU.
    a_sn = _normalize_rows(image_feats, inv_t, Mp, tm)
    b_n = _normalize_rows(text_feats, one, Np, tn)

    li2t_sum, lt2i_sum = _fused_infonce_sums(
        a_sn, b_n, n_rows=M, n_cols=N, label_smoothing=label_smoothing,
        tm=tm, tn=tn)
    loss = 0.5 * (li2t_sum / M + lt2i_sum / N)

    if return_similarity:
        sim_p, m_, n_ = _normalized_similarity(image_feats, text_feats)
        sim_i2t = sim_p[:m_, :n_]
        sim_t2i = sim_i2t.T  # world_size == 1: exact transpose symmetry
        return loss, sim_i2t, sim_t2i
    return loss


if __name__ == "__main__":
    # ---- pure-JAX reference ------------------------------------------------
    def _norm(x):
        return x / jnp.maximum(jnp.linalg.norm(x, axis=-1, keepdims=True),
                               1e-12)

    def _ce(logits, ls):
        logp = jax.nn.log_softmax(logits, axis=-1)
        b = logits.shape[0]
        nll = -logp[jnp.arange(b), jnp.arange(b)]
        smooth = -logp.mean(axis=-1)
        return jnp.mean((1.0 - ls) * nll + ls * smooth)

    def _ref_all(img, txt, temp, ls):
        s_i2t = jnp.matmul(_norm(img), _norm(txt).T,
                           precision=lax.Precision.HIGHEST)
        s_t2i = jnp.matmul(_norm(txt), _norm(img).T,
                           precision=lax.Precision.HIGHEST)
        loss = 0.5 * (_ce(s_i2t / temp, ls) + _ce(s_t2i / temp, ls))
        return loss, s_i2t, s_t2i

    # ---- test 1: module config, small shapes, return_similarity ------------
    batch, embed_dim = 16, 256
    init_temperature = 0.07
    label_smoothing = 0.1

    key = jax.random.PRNGKey(0)
    k_img, k_txt = jax.random.split(key)
    image_feats = jax.random.normal(k_img, (batch, embed_dim), jnp.float32)
    text_feats = jax.random.normal(k_txt, (batch, embed_dim), jnp.float32)
    temperature = jnp.float32(init_temperature)

    loss, sim_i2t, sim_t2i = infonce_loss_forward(
        image_feats, text_feats, temperature,
        label_smoothing=label_smoothing, return_similarity=True)
    jax.block_until_ready(loss)

    ref_loss, ref_i2t, ref_t2i = _ref_all(
        image_feats, text_feats, init_temperature, label_smoothing)

    assert sim_i2t.shape == (batch, batch) and sim_t2i.shape == (batch, batch)
    assert jnp.allclose(sim_i2t, ref_i2t, atol=1e-2, rtol=1e-2)
    assert jnp.allclose(sim_t2i, ref_t2i, atol=1e-2, rtol=1e-2)
    assert jnp.allclose(loss, ref_loss, atol=2e-2, rtol=2e-2)

    # ---- test 2: multi-tile grid (online accumulation path), no smoothing --
    b2, d2 = 384, 128
    k1, k2 = jax.random.split(jax.random.PRNGKey(1))
    img2 = jax.random.normal(k1, (b2, d2), jnp.float32)
    txt2 = jax.random.normal(k2, (b2, d2), jnp.float32)
    loss2 = infonce_loss_forward(
        img2, txt2, jnp.float32(0.1), label_smoothing=0.0,
        tile_m=128, tile_n=128)
    jax.block_until_ready(loss2)
    ref2 = _ref_all(img2, txt2, 0.1, 0.0)[0]
    assert jnp.allclose(loss2, ref2, atol=2e-2, rtol=2e-2)

    # ---- test 3: ragged batch (row+col padding masks) + smoothing -----------
    b3, d3 = 200, 256
    k3, k4 = jax.random.split(jax.random.PRNGKey(2))
    img3 = jax.random.normal(k3, (b3, d3), jnp.float32)
    txt3 = jax.random.normal(k4, (b3, d3), jnp.float32)
    loss3 = infonce_loss_forward(
        img3, txt3, jnp.float32(0.2), label_smoothing=0.05,
        tile_m=64, tile_n=128)
    jax.block_until_ready(loss3)
    ref3 = _ref_all(img3, txt3, 0.2, 0.05)[0]
    assert jnp.allclose(loss3, ref3, atol=2e-2, rtol=2e-2)

    print("KERNEL_OK")
</pallas_src>

<mosaic_0001>
module attributes {stable_mosaic.version = 11 : i64} {
  func.func @_normalize_scale_kernel(%arg0: i32, %arg1: memref<128x256xf32, #tpu.memory_space<vmem>>, %arg2: memref<1x1xf32, #tpu.memory_space<vmem>>, %arg3: memref<128x256xbf16, #tpu.memory_space<vmem>>) attributes {dimension_semantics = [#tpu.dimension_semantics<parallel>], iteration_bounds = array<i64: 1>, scalar_prefetch = 0 : i64, scratch_operands = 0 : i64, tpu.core_type = #tpu.core_type<tc>, window_params = [{transform_indices = @transform_0, window_bounds = array<i64: 128, 256>}, {pipeline_mode = #tpu.pipeline_mode<synchronous>, transform_indices = @transform_1, window_bounds = array<i64: 1, 1>}, {transform_indices = @transform_2, window_bounds = array<i64: 128, 256>}]} {
    %c0 = arith.constant 0 : index
    %c0_0 = arith.constant 0 : index
    %0 = vector.load %arg1[%c0, %c0_0] : memref<128x256xf32, #tpu.memory_space<vmem>>, vector<128x256xf32>
    %1 = arith.mulf %0, %0 : vector<128x256xf32>
    %cst = arith.constant dense<0.000000e+00> : vector<128xf32>
    %2 = vector.multi_reduction <add>, %1, %cst [1] : vector<128x256xf32> to vector<128xf32>
    %3 = vector.shape_cast %2 : vector<128xf32> to vector<128x1xf32>
    %cst_1 = arith.constant 1.000000e-24 : f32
    %4 = vector.broadcast %cst_1 : f32 to vector<128x1xf32>
    %5 = arith.maximumf %3, %4 : vector<128x1xf32>
    %6 = math.rsqrt %5 : vector<128x1xf32>
    %c0_2 = arith.constant 0 : index
    %c0_3 = arith.constant 0 : index
    %7 = vector.load %arg2[%c0_2, %c0_3] : memref<1x1xf32, #tpu.memory_space<vmem>>, vector<1x1xf32>
    %8 = vector.broadcast %7 : vector<1x1xf32> to vector<128x1xf32>
    %9 = arith.mulf %6, %8 : vector<128x1xf32>
    %10 = vector.broadcast %9 : vector<128x1xf32> to vector<128x256xf32>
    %11 = arith.mulf %0, %10 : vector<128x256xf32>
    %12 = arith.truncf %11 : vector<128x256xf32> to vector<128x256xbf16>
    %c0_4 = arith.constant 0 : index
    %c0_5 = arith.constant 0 : index
    %13 = vector.load %arg3[%c0_4, %c0_5] : memref<128x256xbf16, #tpu.memory_space<vmem>>, vector<128x256xbf16>
    tpu.vector_store %arg3[%c0_4, %c0_5], %12 {strides = array<i32>} : memref<128x256xbf16, #tpu.memory_space<vmem>>, vector<128x256xbf16>,
    return
  }
  func.func @transform_0(%arg0: i32) -> (i32, i32) {
    %c0_i32 = arith.constant 0 : i32
    %c0_i32_0 = arith.constant 0 : i32
    return %arg0, %c0_i32 : i32, i32
  }
  func.func @transform_1(%arg0: i32) -> (i32, i32) {
    %c0_i32 = arith.constant 0 : i32
    %c0_i32_0 = arith.constant 0 : i32
    %c0_i32_1 = arith.constant 0 : i32
    return %c0_i32, %c0_i32_0 : i32, i32
  }
  func.func @transform_2(%arg0: i32) -> (i32, i32) {
    %c0_i32 = arith.constant 0 : i32
    %c0_i32_0 = arith.constant 0 : i32
    return %arg0, %c0_i32 : i32, i32
  }
}

module attributes {stable_mosaic.version = 11 : i64} {
  func.func @_normalize_scale_kernel(%arg0: i32, %arg1: memref<16x256xf32, #tpu.memory_space<vmem>>, %arg2: memref<1x1xf32, #tpu.memory_space<vmem>>, %arg3: memref<16x256xbf16, #tpu.memory_space<vmem>>) attributes {dimension_semantics = [#tpu.dimension_semantics<parallel>], iteration_bounds = array<i64: 1>, scalar_prefetch = 0 : i64, scratch_operands = 0 : i64, tpu.core_type = #tpu.core_type<tc>, window_params = [{transform_indices = @transform_0, window_bounds = array<i64: 16, 256>}, {pipeline_mode = #tpu.pipeline_mode<synchronous>, transform_indices = @transform_1, window_bounds = array<i64: 1, 1>}, {transform_indices = @transform_2, window_bounds = array<i64: 16, 256>}]} {
    %c0 = arith.constant 0 : index
    %c0_0 = arith.constant 0 : index
    %0 = vector.load %arg1[%c0, %c0_0] : memref<16x256xf32, #tpu.memory_space<vmem>>, vector<16x256xf32>
    %1 = arith.mulf %0, %0 : vector<16x256xf32>
    %cst = arith.constant dense<0.000000e+00> : vector<16xf32>
    %2 = vector.multi_reduction <add>, %1, %cst [1] : vector<16x256xf32> to vector<16xf32>
    %3 = vector.shape_cast %2 : vector<16xf32> to vector<16x1xf32>
    %cst_1 = arith.constant 1.000000e-24 : f32
    %4 = vector.broadcast %cst_1 : f32 to vector<16x1xf32>
    %5 = arith.maximumf %3, %4 : vector<16x1xf32>
    %6 = math.rsqrt %5 : vector<16x1xf32>
    %c0_2 = arith.constant 0 : index
    %c0_3 = arith.constant 0 : index
    %7 = vector.load %arg2[%c0_2, %c0_3] : memref<1x1xf32, #tpu.memory_space<vmem>>, vector<1x1xf32>
    %8 = vector.broadcast %7 : vector<1x1xf32> to vector<16x1xf32>
    %9 = arith.mulf %6, %8 : vector<16x1xf32>
    %10 = vector.broadcast %9 : vector<16x1xf32> to vector<16x256xf32>
    %11 = arith.mulf %0, %10 : vector<16x256xf32>
    %12 = arith.truncf %11 : vector<16x256xf32> to vector<16x256xbf16>
    %c0_4 = arith.constant 0 : index
    %c0_5 = arith.constant 0 : index
    %13 = vector.load %arg3[%c0_4, %c0_5] : memref<16x256xbf16, #tpu.memory_space<vmem>>, vector<16x256xbf16>
    tpu.vector_store %arg3[%c0_4, %c0_5], %12 {strides = array<i32>} : memref<16x256xbf16, #tpu.memory_space<vmem>>, vector<16x256xbf16>,
    return
  }
  func.func @transform_0(%arg0: i32) -> (i32, i32) {
    %c0_i32 = arith.constant 0 : i32
    %c0_i32_0 = arith.constant 0 : i32
    return %arg0, %c0_i32 : i32, i32
  }
  func.func @transform_1(%arg0: i32) -> (i32, i32) {
    %c0_i32 = arith.constant 0 : i32
    %c0_i32_0 = arith.constant 0 : i32
    %c0_i32_1 = arith.constant 0 : i32
    return %c0_i32, %c0_i32_0 : i32, i32
  }
  func.func @transform_2(%arg0: i32) -> (i32, i32) {
    %c0_i32 = arith.constant 0 : i32
    %c0_i32_0 = arith.constant 0 : i32
    return %arg0, %c0_i32 : i32, i32
  }
}

module attributes {stable_mosaic.version = 11 : i64} {
  func.func @_fused_infonce_kernel(%arg0: i32, %arg1: i32, %arg2: memref<16x256xbf16, #tpu.memory_space<vmem>>, %arg3: memref<128x256xbf16, #tpu.memory_space<vmem>>, %arg4: memref<1x1xf32, #tpu.memory_space<vmem>>, %arg5: memref<1x1xf32, #tpu.memory_space<vmem>>, %arg6: memref<16x1xf32, #tpu.memory_space<vmem>>, %arg7: memref<16x1xf32, #tpu.memory_space<vmem>>, %arg8: memref<16x1xf32, #tpu.memory_space<vmem>>, %arg9: memref<16x1xf32, #tpu.memory_space<vmem>>, %arg10: memref<1x1x128xf32, #tpu.memory_space<vmem>>, %arg11: memref<1x1x128xf32, #tpu.memory_space<vmem>>, %arg12: memref<1x1x128xf32, #tpu.memory_space<vmem>>, %arg13: memref<1x1x128xf32, #tpu.memory_space<vmem>>) attributes {dimension_semantics = [#tpu.dimension_semantics<arbitrary>, #tpu.dimension_semantics<arbitrary>], iteration_bounds = array<i64: 1, 1>, scalar_prefetch = 0 : i64, scratch_operands = 8 : i64, tpu.core_type = #tpu.core_type<tc>, window_params = [{transform_indices = @transform_0, window_bounds = array<i64: 16, 256>}, {transform_indices = @transform_1, window_bounds = array<i64: 128, 256>}, {pipeline_mode = #tpu.pipeline_mode<synchronous>, transform_indices = @transform_2, window_bounds = array<i64: 1, 1>}, {pipeline_mode = #tpu.pipeline_mode<synchronous>, transform_indices = @transform_3, window_bounds = array<i64: 1, 1>}]} {
    %c0_i32 = arith.constant 0 : i32
    %0 = arith.cmpi eq, %arg0, %c0_i32 : i32
    %c0_i32_0 = arith.constant 0 : i32
    %1 = arith.cmpi eq, %arg1, %c0_i32_0 : i32
    %2 = arith.andi %0, %1 : i1
    %3 = arith.extui %2 : i1 to i32
    %c0_i32_1 = arith.constant 0 : i32
    %4 = arith.cmpi ne, %3, %c0_i32_1 : i32
    scf.if %4 {
      %cst_62 = arith.constant 0.000000e+00 : f32
      %121 = vector.broadcast %cst_62 : f32 to vector<1x1xf32>
      %c0_63 = arith.constant 0 : index
      %c0_64 = arith.constant 0 : index
      %122 = vector.load %arg4[%c0_63, %c0_64] : memref<1x1xf32, #tpu.memory_space<vmem>>, vector<1x1xf32>
      tpu.vector_store %arg4[%c0_63, %c0_64], %121 {strides = array<i32>} : memref<1x1xf32, #tpu.memory_space<vmem>>, vector<1x1xf32>,
      %cst_65 = arith.constant 0.000000e+00 : f32
      %123 = vector.broadcast %cst_65 : f32 to vector<1x1xf32>
      %c0_66 = arith.constant 0 : index
      %c0_67 = arith.constant 0 : index
      %124 = vector.load %arg5[%c0_66, %c0_67] : memref<1x1xf32, #tpu.memory_space<vmem>>, vector<1x1xf32>
      tpu.vector_store %arg5[%c0_66, %c0_67], %123 {strides = array<i32>} : memref<1x1xf32, #tpu.memory_space<vmem>>, vector<1x1xf32>,
    } else {
    }
    %c0_i32_2 = arith.constant 0 : i32
    %5 = arith.cmpi eq, %arg1, %c0_i32_2 : i32
    %6 = arith.extui %5 : i1 to i32
    %c0_i32_3 = arith.constant 0 : i32
    %7 = arith.cmpi ne, %6, %c0_i32_3 : i32
    scf.if %7 {
      %cst_62 = arith.constant -1.000000e+30 : f32
      %121 = vector.broadcast %cst_62 : f32 to vector<16x1xf32>
      %c0_63 = arith.constant 0 : index
      %c0_64 = arith.constant 0 : index
      %122 = vector.load %arg6[%c0_63, %c0_64] : memref<16x1xf32, #tpu.memory_space<vmem>>, vector<16x1xf32>
      tpu.vector_store %arg6[%c0_63, %c0_64], %121 {strides = array<i32>} : memref<16x1xf32, #tpu.memory_space<vmem>>, vector<16x1xf32>,
      %cst_65 = arith.constant 0.000000e+00 : f32
      %123 = vector.broadcast %cst_65 : f32 to vector<16x1xf32>
      %c0_66 = arith.constant 0 : index
      %c0_67 = arith.constant 0 : index
      %124 = vector.load %arg7[%c0_66, %c0_67] : memref<16x1xf32, #tpu.memory_space<vmem>>, vector<16x1xf32>
      tpu.vector_store %arg7[%c0_66, %c0_67], %123 {strides = array<i32>} : memref<16x1xf32, #tpu.memory_space<vmem>>, vector<16x1xf32>,
      %cst_68 = arith.constant 0.000000e+00 : f32
      %125 = vector.broadcast %cst_68 : f32 to vector<16x1xf32>
      %c0_69 = arith.constant 0 : index
      %c0_70 = arith.constant 0 : index
      %126 = vector.load %arg8[%c0_69, %c0_70] : memref<16x1xf32, #tpu.memory_space<vmem>>, vector<16x1xf32>
      tpu.vector_store %arg8[%c0_69, %c0_70], %125 {strides = array<i32>} : memref<16x1xf32, #tpu.memory_space<vmem>>, vector<16x1xf32>,
      %cst_71 = arith.constant 0.000000e+00 : f32
      %127 = vector.broadcast %cst_71 : f32 to vector<16x1xf32>
      %c0_72 = arith.constant 0 : index
      %c0_73 = arith.constant 0 : index
      %128 = vector.load %arg9[%c0_72, %c0_73] : memref<16x1xf32, #tpu.memory_space<vmem>>, vector<16x1xf32>
      tpu.vector_store %arg9[%c0_72, %c0_73], %127 {strides = array<i32>} : memref<16x1xf32, #tpu.memory_space<vmem>>, vector<16x1xf32>,
    } else {
    }
    %c0_i32_4 = arith.constant 0 : i32
    %8 = arith.cmpi eq, %arg0, %c0_i32_4 : i32
    %9 = arith.extui %8 : i1 to i32
    %c0_i32_5 = arith.constant 0 : i32
    %10 = arith.cmpi ne, %9, %c0_i32_5 : i32
    scf.if %10 {
      %cst_62 = arith.constant 0.000000e+00 : f32
      %121 = vector.broadcast %cst_62 : f32 to vector<1x128xf32>
      %cst_63 = arith.constant -1.000000e+30 : f32
      %122 = vector.broadcast %cst_63 : f32 to vector<1x128xf32>
      %123 = arith.index_cast %arg1 : i32 to index
      %c0_64 = arith.constant 0 : index
      %c0_65 = arith.constant 0 : index
      %124 = vector.load %arg10[%123, %c0_64, %c0_65] : memref<1x1x128xf32, #tpu.memory_space<vmem>>, vector<1x1x128xf32>
      %125 = vector.shape_cast %124 : vector<1x1x128xf32> to vector<1x128xf32>
      %126 = vector.shape_cast %122 : vector<1x128xf32> to vector<1x1x128xf32>
      tpu.vector_store %arg10[%123, %c0_64, %c0_65], %126 {strides = array<i32>} : memref<1x1x128xf32, #tpu.memory_space<vmem>>, vector<1x1x128xf32>,
      %127 = arith.index_cast %arg1 : i32 to index
      %c0_66 = arith.constant 0 : index
      %c0_67 = arith.constant 0 : index
      %128 = vector.load %arg11[%127, %c0_66, %c0_67] : memref<1x1x128xf32, #tpu.memory_space<vmem>>, vector<1x1x128xf32>
      %129 = vector.shape_cast %128 : vector<1x1x128xf32> to vector<1x128xf32>
      %130 = vector.shape_cast %121 : vector<1x128xf32> to vector<1x1x128xf32>
      tpu.vector_store %arg11[%127, %c0_66, %c0_67], %130 {strides = array<i32>} : memref<1x1x128xf32, #tpu.memory_space<vmem>>, vector<1x1x128xf32>,
      %131 = arith.index_cast %arg1 : i32 to index
      %c0_68 = arith.constant 0 : index
      %c0_69 = arith.constant 0 : index
      %132 = vector.load %arg12[%131, %c0_68, %c0_69] : memref<1x1x128xf32, #tpu.memory_space<vmem>>, vector<1x1x128xf32>
      %133 = vector.shape_cast %132 : vector<1x1x128xf32> to vector<1x128xf32>
      %134 = vector.shape_cast %121 : vector<1x128xf32> to vector<1x1x128xf32>
      tpu.vector_store %arg12[%131, %c0_68, %c0_69], %134 {strides = array<i32>} : memref<1x1x128xf32, #tpu.memory_space<vmem>>, vector<1x1x128xf32>,
      %135 = arith.index_cast %arg1 : i32 to index
      %c0_70 = arith.constant 0 : index
      %c0_71 = arith.constant 0 : index
      %136 = vector.load %arg13[%135, %c0_70, %c0_71] : memref<1x1x128xf32, #tpu.memory_space<vmem>>, vector<1x1x128xf32>
      %137 = vector.shape_cast %136 : vector<1x1x128xf32> to vector<1x128xf32>
      %138 = vector.shape_cast %121 : vector<1x128xf32> to vector<1x1x128xf32>
      tpu.vector_store %arg13[%135, %c0_70, %c0_71], %138 {strides = array<i32>} : memref<1x1x128xf32, #tpu.memory_space<vmem>>, vector<1x1x128xf32>,
    } else {
    }
    %c0 = arith.constant 0 : index
    %c0_6 = arith.constant 0 : index
    %11 = vector.load %arg2[%c0, %c0_6] : memref<16x256xbf16, #tpu.memory_space<vmem>>, vector<16x256xbf16>
    %c0_7 = arith.constant 0 : index
    %c0_8 = arith.constant 0 : index
    %12 = vector.load %arg3[%c0_7, %c0_8] : memref<128x256xbf16, #tpu.memory_space<vmem>>, vector<128x256xbf16>
    %cst = arith.constant dense<0.000000e+00> : vector<16x128xf32>
    %13 = tpu.matmul %11, %12, %cst {dimension_numbers = #tpu.dot_dimension_numbers<[1], [1], [0], [0], [0, 0, 1, 0], [], []>} : vector<16x256xbf16>, vector<128x256xbf16>, vector<16x128xf32> -> vector<16x128xf32>
    %14 = tpu.iota {dimensions = array<i32: 0>} : vector<16x1xi32>
    %c16_i32 = arith.constant 16 : i32
    %15 = arith.muli %arg0, %c16_i32 : i32
    %16 = vector.broadcast %15 : i32 to vector<16x1xi32>
    %17 = arith.addi %14, %16 : vector<16x1xi32>
    %18 = tpu.iota {dimensions = array<i32: 1>} : vector<1x128xi32>
    %c128_i32 = arith.constant 128 : i32
    %19 = arith.muli %arg1, %c128_i32 : i32
    %20 = vector.broadcast %19 : i32 to vector<1x128xi32>
    %21 = arith.addi %18, %20 : vector<1x128xi32>
    %22 = vector.broadcast %17 : vector<16x1xi32> to vector<16x128xi32>
    %23 = vector.broadcast %21 : vector<1x128xi32> to vector<16x128xi32>
    %24 = arith.cmpi eq, %22, %23 : vector<16x128xi32>
    %cst_9 = arith.constant 0.000000e+00 : f32
    %25 = vector.broadcast %cst_9 : f32 to vector<16x128xf32>
    %26 = arith.select %24, %13, %25 : vector<16x128xi1>, vector<16x128xf32>
    %c16_i32_10 = arith.constant 16 : i32
    %27 = vector.broadcast %c16_i32_10 : i32 to vector<1x128xi32>
    %28 = arith.cmpi slt, %21, %27 : vector<1x128xi32>
    %cst_11 = arith.constant -1.000000e+30 : f32
    %29 = vector.shape_cast %28 : vector<1x128xi1> to vector<1x128xi1>
    %30 = vector.broadcast %29 : vector<1x128xi1> to vector<16x128xi1>
    %31 = vector.broadcast %cst_11 : f32 to vector<16x128xf32>
    %32 = arith.select %30, %13, %31 : vector<16x128xi1>, vector<16x128xf32>
    %c0_12 = arith.constant 0 : index
    %c0_13 = arith.constant 0 : index
    %33 = vector.load %arg6[%c0_12, %c0_13] : memref<16x1xf32, #tpu.memory_space<vmem>>, vector<16x1xf32>
    %cst_14 = arith.constant dense<0xFF800000> : vector<16xf32>
    %34 = vector.multi_reduction <maximumf>, %32, %cst_14 [1] : vector<16x128xf32> to vector<16xf32>
    %35 = vector.shape_cast %34 : vector<16xf32> to vector<16x1xf32>
    %36 = arith.maximumf %33, %35 : vector<16x1xf32>
    %c0_15 = arith.constant 0 : index
    %c0_16 = arith.constant 0 : index
    %37 = vector.load %arg6[%c0_15, %c0_16] : memref<16x1xf32, #tpu.memory_space<vmem>>, vector<16x1xf32>
    %38 = arith.subf %37, %36 : vector<16x1xf32>
    %39 = math.exp %38 : vector<16x1xf32>
    %c0_17 = arith.constant 0 : index
    %c0_18 = arith.constant 0 : index
    %40 = vector.load %arg7[%c0_17, %c0_18] : memref<16x1xf32, #tpu.memory_space<vmem>>, vector<16x1xf32>
    %41 = arith.mulf %39, %40 : vector<16x1xf32>
    %42 = vector.broadcast %36 : vector<16x1xf32> to vector<16x128xf32>
    %43 = arith.subf %32, %42 : vector<16x128xf32>
    %44 = math.exp %43 : vector<16x128xf32>
    %cst_19 = arith.constant dense<0.000000e+00> : vector<16xf32>
    %45 = vector.multi_reduction <add>, %44, %cst_19 [1] : vector<16x128xf32> to vector<16xf32>
    %46 = vector.shape_cast %45 : vector<16xf32> to vector<16x1xf32>
    %47 = arith.addf %41, %46 : vector<16x1xf32>
    %c0_20 = arith.constant 0 : index
    %c0_21 = arith.constant 0 : index
    %48 = vector.load %arg7[%c0_20, %c0_21] : memref<16x1xf32, #tpu.memory_space<vmem>>, vector<16x1xf32>
    tpu.vector_store %arg7[%c0_20, %c0_21], %47 {strides = array<i32>} : memref<16x1xf32, #tpu.memory_space<vmem>>, vector<16x1xf32>,
    %c0_22 = arith.constant 0 : index
    %c0_23 = arith.constant 0 : index
    %49 = vector.load %arg6[%c0_22, %c0_23] : memref<16x1xf32, #tpu.memory_space<vmem>>, vector<16x1xf32>
    tpu.vector_store %arg6[%c0_22, %c0_23], %36 {strides = array<i32>} : memref<16x1xf32, #tpu.memory_space<vmem>>, vector<16x1xf32>,
    %c0_24 = arith.constant 0 : index
    %c0_25 = arith.constant 0 : index
    %50 = vector.load %arg9[%c0_24, %c0_25] : memref<16x1xf32, #tpu.memory_space<vmem>>, vector<16x1xf32>
    %cst_26 = arith.constant dense<0.000000e+00> : vector<16xf32>
    %51 = vector.multi_reduction <add>, %26, %cst_26 [1] : vector<16x128xf32> to vector<16xf32>
    %52 = vector.shape_cast %51 : vector<16xf32> to vector<16x1xf32>
    %53 = arith.addf %50, %52 : vector<16x1xf32>
    %c0_27 = arith.constant 0 : index
    %c0_28 = arith.constant 0 : index
    %54 = vector.load %arg9[%c0_27, %c0_28] : memref<16x1xf32, #tpu.memory_space<vmem>>, vector<16x1xf32>
    tpu.vector_store %arg9[%c0_27, %c0_28], %53 {strides = array<i32>} : memref<16x1xf32, #tpu.memory_space<vmem>>, vector<16x1xf32>,
    %c16_i32_29 = arith.constant 16 : i32
    %55 = vector.broadcast %c16_i32_29 : i32 to vector<1x128xi32>
    %56 = arith.cmpi slt, %21, %55 : vector<1x128xi32>
    %cst_30 = arith.constant 0.000000e+00 : f32
    %57 = vector.shape_cast %56 : vector<1x128xi1> to vector<1x128xi1>
    %58 = vector.broadcast %57 : vector<1x128xi1> to vector<16x128xi1>
    %59 = vector.broadcast %cst_30 : f32 to vector<16x128xf32>
    %60 = arith.select %58, %13, %59 : vector<16x128xi1>, vector<16x128xf32>
    %c0_31 = arith.constant 0 : index
    %c0_32 = arith.constant 0 : index
    %61 = vector.load %arg8[%c0_31, %c0_32] : memref<16x1xf32, #tpu.memory_space<vmem>>, vector<16x1xf32>
    %cst_33 = arith.constant dense<0.000000e+00> : vector<16xf32>
    %62 = vector.multi_reduction <add>, %60, %cst_33 [1] : vector<16x128xf32> to vector<16xf32>
    %63 = vector.shape_cast %62 : vector<16xf32> to vector<16x1xf32>
    %64 = arith.addf %61, %63 : vector<16x1xf32>
    %c0_34 = arith.constant 0 : index
    %c0_35 = arith.constant 0 : index
    %65 = vector.load %arg8[%c0_34, %c0_35] : memref<16x1xf32, #tpu.memory_space<vmem>>, vector<16x1xf32>
    tpu.vector_store %arg8[%c0_34, %c0_35], %64 {strides = array<i32>} : memref<16x1xf32, #tpu.memory_space<vmem>>, vector<16x1xf32>,
    %66 = arith.index_cast %arg1 : i32 to index
    %c0_36 = arith.constant 0 : index
    %c0_37 = arith.constant 0 : index
    %67 = vector.load %arg10[%66, %c0_36, %c0_37] : memref<1x1x128xf32, #tpu.memory_space<vmem>>, vector<1x1x128xf32>
    %68 = vector.shape_cast %67 : vector<1x1x128xf32> to vector<1x128xf32>
    %cst_38 = arith.constant dense<0xFF800000> : vector<128xf32>
    %69 = vector.multi_reduction <maximumf>, %13, %cst_38 [0] : vector<16x128xf32> to vector<128xf32>
    %70 = vector.shape_cast %69 : vector<128xf32> to vector<1x128xf32>
    %71 = arith.maximumf %68, %70 : vector<1x128xf32>
    %72 = arith.index_cast %arg1 : i32 to index
    %c0_39 = arith.constant 0 : index
    %c0_40 = arith.constant 0 : index
    %73 = vector.load %arg10[%72, %c0_39, %c0_40] : memref<1x1x128xf32, #tpu.memory_space<vmem>>, vector<1x1x128xf32>
    %74 = vector.shape_cast %73 : vector<1x1x128xf32> to vector<1x128xf32>
    %75 = arith.subf %74, %71 : vector<1x128xf32>
    %76 = math.exp %75 : vector<1x128xf32>
    %77 = arith.index_cast %arg1 : i32 to index
    %c0_41 = arith.constant 0 : index
    %c0_42 = arith.constant 0 : index
    %78 = vector.load %arg11[%77, %c0_41, %c0_42] : memref<1x1x128xf32, #tpu.memory_space<vmem>>, vector<1x1x128xf32>
    %79 = vector.shape_cast %78 : vector<1x1x128xf32> to vector<1x128xf32>
    %80 = arith.mulf %76, %79 : vector<1x128xf32>
    %81 = vector.broadcast %71 : vector<1x128xf32> to vector<16x128xf32>
    %82 = arith.subf %13, %81 : vector<16x128xf32>
    %83 = math.exp %82 : vector<16x128xf32>
    %cst_43 = arith.constant dense<0.000000e+00> : vector<128xf32>
    %84 = vector.multi_reduction <add>, %83, %cst_43 [0] : vector<16x128xf32> to vector<128xf32>
    %85 = vector.shape_cast %84 : vector<128xf32> to vector<1x128xf32>
    %86 = arith.addf %80, %85 : vector<1x128xf32>
    %87 = arith.index_cast %arg1 : i32 to index
    %c0_44 = arith.constant 0 : index
    %c0_45 = arith.constant 0 : index
    %88 = vector.load %arg11[%87, %c0_44, %c0_45] : memref<1x1x128xf32, #tpu.memory_space<vmem>>, vector<1x1x128xf32>
    %89 = vector.shape_cast %88 : vector<1x1x128xf32> to vector<1x128xf32>
    %90 = vector.shape_cast %86 : vector<1x128xf32> to vector<1x1x128xf32>
    tpu.vector_store %arg11[%87, %c0_44, %c0_45], %90 {strides = array<i32>} : memref<1x1x128xf32, #tpu.memory_space<vmem>>, vector<1x1x128xf32>,
    %91 = arith.index_cast %arg1 : i32 to index
    %c0_46 = arith.constant 0 : index
    %c0_47 = arith.constant 0 : index
    %92 = vector.load %arg10[%91, %c0_46, %c0_47] : memref<1x1x128xf32, #tpu.memory_space<vmem>>, vector<1x1x128xf32>
    %93 = vector.shape_cast %92 : vector<1x1x128xf32> to vector<1x128xf32>
    %94 = vector.shape_cast %71 : vector<1x128xf32> to vector<1x1x128xf32>
    tpu.vector_store %arg10[%91, %c0_46, %c0_47], %94 {strides = array<i32>} : memref<1x1x128xf32, #tpu.memory_space<vmem>>, vector<1x1x128xf32>,
    %95 = arith.index_cast %arg1 : i32 to index
    %c0_48 = arith.constant 0 : index
    %c0_49 = arith.constant 0 : index
    %96 = vector.load %arg13[%95, %c0_48, %c0_49] : memref<1x1x128xf32, #tpu.memory_space<vmem>>, vector<1x1x128xf32>
    %97 = vector.shape_cast %96 : vector<1x1x128xf32> to vector<1x128xf32>
    %cst_50 = arith.constant dense<0.000000e+00> : vector<128xf32>
    %98 = vector.multi_reduction <add>, %26, %cst_50 [0] : vector<16x128xf32> to vector<128xf32>
    %99 = vector.shape_cast %98 : vector<128xf32> to vector<1x128xf32>
    %100 = arith.addf %97, %99 : vector<1x128xf32>
    %101 = arith.index_cast %arg1 : i32 to index
    %c0_51 = arith.constant 0 : index
    %c0_52 = arith.constant 0 : index
    %102 = vector.load %arg13[%101, %c0_51, %c0_52] : memref<1x1x128xf32, #tpu.memory_space<vmem>>, vector<1x1x128xf32>
    %103 = vector.shape_cast %102 : vector<1x1x128xf32> to vector<1x128xf32>
    %104 = vector.shape_cast %100 : vector<1x128xf32> to vector<1x1x128xf32>
    tpu.vector_store %arg13[%101, %c0_51, %c0_52], %104 {strides = array<i32>} : memref<1x1x128xf32, #tpu.memory_space<vmem>>, vector<1x1x128xf32>,
    %105 = arith.index_cast %arg1 : i32 to index
    %c0_53 = arith.constant 0 : index
    %c0_54 = arith.constant 0 : index
    %106 = vector.load %arg12[%105, %c0_53, %c0_54] : memref<1x1x128xf32, #tpu.memory_space<vmem>>, vector<1x1x128xf32>
    %107 = vector.shape_cast %106 : vector<1x1x128xf32> to vector<1x128xf32>
    %cst_55 = arith.constant dense<0.000000e+00> : vector<128xf32>
    %108 = vector.multi_reduction <add>, %13, %cst_55 [0] : vector<16x128xf32> to vector<128xf32>
    %109 = vector.shape_cast %108 : vector<128xf32> to vector<1x128xf32>
    %110 = arith.addf %107, %109 : vector<1x128xf32>
    %111 = arith.index_cast %arg1 : i32 to index
    %c0_56 = arith.constant 0 : index
    %c0_57 = arith.constant 0 : index
    %112 = vector.load %arg12[%111, %c0_56, %c0_57] : memref<1x1x128xf32, #tpu.memory_space<vmem>>, vector<1x1x128xf32>
    %113 = vector.shape_cast %112 : vector<1x1x128xf32> to vector<1x128xf32>
    %114 = vector.shape_cast %110 : vector<1x128xf32> to vector<1x1x128xf32>
    tpu.vector_store %arg12[%111, %c0_56, %c0_57], %114 {strides = array<i32>} : memref<1x1x128xf32, #tpu.memory_space<vmem>>, vector<1x1x128xf32>,
    %c0_i32_58 = arith.constant 0 : i32
    %115 = arith.cmpi eq, %arg1, %c0_i32_58 : i32
    %116 = arith.extui %115 : i1 to i32
    %c0_i32_59 = arith.constant 0 : i32
    %117 = arith.cmpi ne, %116, %c0_i32_59 : i32
    scf.if %117 {
      %c0_62 = arith.constant 0 : index
      %c0_63 = arith.constant 0 : index
      %121 = vector.load %arg6[%c0_62, %c0_63] : memref<16x1xf32, #tpu.memory_space<vmem>>, vector<16x1xf32>
      %c0_64 = arith.constant 0 : index
      %c0_65 = arith.constant 0 : index
      %122 = vector.load %arg7[%c0_64, %c0_65] : memref<16x1xf32, #tpu.memory_space<vmem>>, vector<16x1xf32>
      %123 = math.log %122 : vector<16x1xf32>
      %124 = arith.addf %121, %123 : vector<16x1xf32>
      %c0_66 = arith.constant 0 : index
      %c0_67 = arith.constant 0 : index
      %125 = vector.load %arg9[%c0_66, %c0_67] : memref<16x1xf32, #tpu.memory_space<vmem>>, vector<16x1xf32>
      %cst_68 = arith.constant 0.899999976 : f32
      %126 = vector.broadcast %cst_68 : f32 to vector<16x1xf32>
      %127 = arith.mulf %126, %125 : vector<16x1xf32>
      %128 = arith.subf %124, %127 : vector<16x1xf32>
      %c0_69 = arith.constant 0 : index
      %c0_70 = arith.constant 0 : index
      %129 = vector.load %arg8[%c0_69, %c0_70] : memref<16x1xf32, #tpu.memory_space<vmem>>, vector<16x1xf32>
      %cst_71 = arith.constant 6.250000e-03 : f32
      %130 = vector.broadcast %cst_71 : f32 to vector<16x1xf32>
      %131 = arith.mulf %130, %129 : vector<16x1xf32>
      %132 = arith.subf %128, %131 : vector<16x1xf32>
      %c0_72 = arith.constant 0 : index
      %c0_73 = arith.constant 0 : index
      %133 = vector.load %arg4[%c0_72, %c0_73] : memref<1x1xf32, #tpu.memory_space<vmem>>, vector<1x1xf32>
      %cst_74 = arith.constant dense<0.000000e+00> : vector<1xf32>
      %134 = vector.multi_reduction <add>, %132, %cst_74 [0] : vector<16x1xf32> to vector<1xf32>
      %135 = vector.shape_cast %134 : vector<1xf32> to vector<1x1xf32>
      %136 = arith.addf %133, %135 : vector<1x1xf32>
      %c0_75 = arith.constant 0 : index
      %c0_76 = arith.constant 0 : index
      %137 = vector.load %arg4[%c0_75, %c0_76] : memref<1x1xf32, #tpu.memory_space<vmem>>, vector<1x1xf32>
      tpu.vector_store %arg4[%c0_75, %c0_76], %136 {strides = array<i32>} : memref<1x1xf32, #tpu.memory_space<vmem>>, vector<1x1xf32>,
    } else {
    }
    %c0_i32_60 = arith.constant 0 : i32
    %118 = arith.cmpi eq, %arg0, %c0_i32_60 : i32
    %119 = arith.extui %118 : i1 to i32
    %c0_i32_61 = arith.constant 0 : i32
    %120 = arith.cmpi ne, %119, %c0_i32_61 : i32
    scf.if %120 {
      %121 = arith.index_cast %arg1 : i32 to index
      %c0_62 = arith.constant 0 : index
      %c0_63 = arith.constant 0 : index
      %122 = vector.load %arg10[%121, %c0_62, %c0_63] : memref<1x1x128xf32, #tpu.memory_space<vmem>>, vector<1x1x128xf32>
      %123 = vector.shape_cast %122 : vector<1x1x128xf32> to vector<1x128xf32>
      %124 = arith.index_cast %arg1 : i32 to index
      %c0_64 = arith.constant 0 : index
      %c0_65 = arith.constant 0 : index
      %125 = vector.load %arg11[%124, %c0_64, %c0_65] : memref<1x1x128xf32, #tpu.memory_space<vmem>>, vector<1x1x128xf32>
      %126 = vector.shape_cast %125 : vector<1x1x128xf32> to vector<1x128xf32>
      %127 = math.log %126 : vector<1x128xf32>
      %128 = arith.addf %123, %127 : vector<1x128xf32>
      %129 = arith.index_cast %arg1 : i32 to index
      %c0_66 = arith.constant 0 : index
      %c0_67 = arith.constant 0 : index
      %130 = vector.load %arg13[%129, %c0_66, %c0_67] : memref<1x1x128xf32, #tpu.memory_space<vmem>>, vector<1x1x128xf32>
      %131 = vector.shape_cast %130 : vector<1x1x128xf32> to vector<1x128xf32>
      %cst_68 = arith.constant 0.899999976 : f32
      %132 = vector.broadcast %cst_68 : f32 to vector<1x128xf32>
      %133 = arith.mulf %132, %131 : vector<1x128xf32>
      %134 = arith.subf %128, %133 : vector<1x128xf32>
      %135 = arith.index_cast %arg1 : i32 to index
      %c0_69 = arith.constant 0 : index
      %c0_70 = arith.constant 0 : index
      %136 = vector.load %arg12[%135, %c0_69, %c0_70] : memref<1x1x128xf32, #tpu.memory_space<vmem>>, vector<1x1x128xf32>
      %137 = vector.shape_cast %136 : vector<1x1x128xf32> to vector<1x128xf32>
      %cst_71 = arith.constant 6.250000e-03 : f32
      %138 = vector.broadcast %cst_71 : f32 to vector<1x128xf32>
      %139 = arith.mulf %138, %137 : vector<1x128xf32>
      %140 = arith.subf %134, %139 : vector<1x128xf32>
      %c16_i32_72 = arith.constant 16 : i32
      %141 = vector.broadcast %c16_i32_72 : i32 to vector<1x128xi32>
      %142 = arith.cmpi slt, %21, %141 : vector<1x128xi32>
      %cst_73 = arith.constant 0.000000e+00 : f32
      %143 = vector.broadcast %cst_73 : f32 to vector<1x128xf32>
      %144 = arith.select %142, %140, %143 : vector<1x128xi1>, vector<1x128xf32>
      %c0_74 = arith.constant 0 : index
      %c0_75 = arith.constant 0 : index
      %145 = vector.load %arg5[%c0_74, %c0_75] : memref<1x1xf32, #tpu.memory_space<vmem>>, vector<1x1xf32>
      %cst_76 = arith.constant dense<0.000000e+00> : vector<1xf32>
      %146 = vector.multi_reduction <add>, %144, %cst_76 [1] : vector<1x128xf32> to vector<1xf32>
      %147 = vector.shape_cast %146 : vector<1xf32> to vector<1x1xf32>
      %148 = arith.addf %145, %147 : vector<1x1xf32>
      %c0_77 = arith.constant 0 : index
      %c0_78 = arith.constant 0 : index
      %149 = vector.load %arg5[%c0_77, %c0_78] : memref<1x1xf32, #tpu.memory_space<vmem>>, vector<1x1xf32>
      tpu.vector_store %arg5[%c0_77, %c0_78], %148 {strides = array<i32>} : memref<1x1xf32, #tpu.memory_space<vmem>>, vector<1x1xf32>,
    } else {
    }
    return
  }
  func.func @transform_0(%arg0: i32, %arg1: i32) -> (i32, i32) {
    %c0_i32 = arith.constant 0 : i32
    %c0_i32_0 = arith.constant 0 : i32
    return %arg0, %c0_i32 : i32, i32
  }
  func.func @transform_1(%arg0: i32, %arg1: i32) -> (i32, i32) {
    %c0_i32 = arith.constant 0 : i32
    %c0_i32_0 = arith.constant 0 : i32
    return %arg1, %c0_i32 : i32, i32
  }
  func.func @transform_2(%arg0: i32, %arg1: i32) -> (i32, i32) {
    %c0_i32 = arith.constant 0 : i32
    %c0_i32_0 = arith.constant 0 : i32
    %c0_i32_1 = arith.constant 0 : i32
    return %c0_i32, %c0_i32_0 : i32, i32
  }
  func.func @transform_3(%arg0: i32, %arg1: i32) -> (i32, i32) {
    %c0_i32 = arith.constant 0 : i32
    %c0_i32_0 = arith.constant 0 : i32
    %c0_i32_1 = arith.constant 0 : i32
    return %c0_i32, %c0_i32_0 : i32, i32
  }
}

module attributes {stable_mosaic.version = 11 : i64} {
  func.func @_sim_kernel(%arg0: i32, %arg1: i32, %arg2: memref<16x256xf32, #tpu.memory_space<vmem>>, %arg3: memref<128x256xf32, #tpu.memory_space<vmem>>, %arg4: memref<16x128xf32, #tpu.memory_space<vmem>>) attributes {dimension_semantics = [#tpu.dimension_semantics<parallel>, #tpu.dimension_semantics<parallel>], iteration_bounds = array<i64: 1, 1>, scalar_prefetch = 0 : i64, scratch_operands = 0 : i64, tpu.core_type = #tpu.core_type<tc>, window_params = [{transform_indices = @transform_0, window_bounds = array<i64: 16, 256>}, {transform_indices = @transform_1, window_bounds = array<i64: 128, 256>}, {transform_indices = @transform_2, window_bounds = array<i64: 16, 128>}]} {
    %c0 = arith.constant 0 : index
    %c0_0 = arith.constant 0 : index
    %0 = vector.load %arg2[%c0, %c0_0] : memref<16x256xf32, #tpu.memory_space<vmem>>, vector<16x256xf32>
    %c0_1 = arith.constant 0 : index
    %c0_2 = arith.constant 0 : index
    %1 = vector.load %arg3[%c0_1, %c0_2] : memref<128x256xf32, #tpu.memory_space<vmem>>, vector<128x256xf32>
    %2 = arith.mulf %0, %0 : vector<16x256xf32>
    %cst = arith.constant dense<0.000000e+00> : vector<16xf32>
    %3 = vector.multi_reduction <add>, %2, %cst [1] : vector<16x256xf32> to vector<16xf32>
    %4 = vector.shape_cast %3 : vector<16xf32> to vector<16x1xf32>
    %cst_3 = arith.constant 1.000000e-24 : f32
    %5 = vector.broadcast %cst_3 : f32 to vector<16x1xf32>
    %6 = arith.maximumf %4, %5 : vector<16x1xf32>
    %7 = math.rsqrt %6 : vector<16x1xf32>
    %8 = vector.broadcast %7 : vector<16x1xf32> to vector<16x256xf32>
    %9 = arith.mulf %0, %8 : vector<16x256xf32>
    %10 = arith.truncf %9 : vector<16x256xf32> to vector<16x256xbf16>
    %11 = arith.mulf %1, %1 : vector<128x256xf32>
    %cst_4 = arith.constant dense<0.000000e+00> : vector<128xf32>
    %12 = vector.multi_reduction <add>, %11, %cst_4 [1] : vector<128x256xf32> to vector<128xf32>
    %13 = vector.shape_cast %12 : vector<128xf32> to vector<128x1xf32>
    %cst_5 = arith.constant 1.000000e-24 : f32
    %14 = vector.broadcast %cst_5 : f32 to vector<128x1xf32>
    %15 = arith.maximumf %13, %14 : vector<128x1xf32>
    %16 = math.rsqrt %15 : vector<128x1xf32>
    %17 = vector.broadcast %16 : vector<128x1xf32> to vector<128x256xf32>
    %18 = arith.mulf %1, %17 : vector<128x256xf32>
    %19 = arith.truncf %18 : vector<128x256xf32> to vector<128x256xbf16>
    %cst_6 = arith.constant dense<0.000000e+00> : vector<16x128xf32>
    %20 = tpu.matmul %10, %19, %cst_6 {dimension_numbers = #tpu.dot_dimension_numbers<[1], [1], [0], [0], [0, 0, 1, 0], [], []>} : vector<16x256xbf16>, vector<128x256xbf16>, vector<16x128xf32> -> vector<16x128xf32>
    %c0_7 = arith.constant 0 : index
    %c0_8 = arith.constant 0 : index
    %21 = vector.load %arg4[%c0_7, %c0_8] : memref<16x128xf32, #tpu.memory_space<vmem>>, vector<16x128xf32>
    tpu.vector_store %arg4[%c0_7, %c0_8], %20 {strides = array<i32>} : memref<16x128xf32, #tpu.memory_space<vmem>>, vector<16x128xf32>,
    return
  }
  func.func @transform_0(%arg0: i32, %arg1: i32) -> (i32, i32) {
    %c0_i32 = arith.constant 0 : i32
    %c0_i32_0 = arith.constant 0 : i32
    return %arg0, %c0_i32 : i32, i32
  }
  func.func @transform_1(%arg0: i32, %arg1: i32) -> (i32, i32) {
    %c0_i32 = arith.constant 0 : i32
    %c0_i32_0 = arith.constant 0 : i32
    return %arg1, %c0_i32 : i32, i32
  }
  func.func @transform_2(%arg0: i32, %arg1: i32) -> (i32, i32) {
    %c0_i32 = arith.constant 0 : i32
    return %arg0, %arg1 : i32, i32
  }
}

</mosaic_0001>

<llo_original>
// kernel: infonce_loss_forward.4
$region0: #{infonce_loss_forward.4}
  #allocation0 [shape = 'u32[]', space=smem, size = 0x4, offset = 0x4, fixed_abs, tag = 'smem constant byte address 0x4 - core index']
  #allocation1 [shape = 'u32[72,128]{1,0:T(1,128)}', space=vmem, size = 0x9000, scoped, tag = 'internal scratch']
  #allocation2 [shape = 'f32[1,1]{1,0:T(1,128)S(1)}', space=vmem, size = 0x200, scoped, tag = 'scoped memory for infonce_loss_forward.4']
  %s0 = inlined_call_operand.vmem [shape: f32[16,256], index: 0, kind: input, shape index: {}]
  %s1 = inlined_call_operand.<no memory space> [shape: f32[1,1], index: 1, kind: input, shape index: {}]
  %s2 = inlined_call_operand.vmem [shape: bf16[16,256], index: 2, kind: output, shape index: {}]
  %s3 = sld [smem:[#allocation0]]
  $region18: #{infonce_loss_forward.4} parent=0
    _
  %s5 = ssub.s32 1, %s3
  %s6 = scalar_select 0, %s5, %s3
  %v7 = vstv %s1
  %8 = vst [vmem:[#allocation2] sm:$0x1] %v7
  // Predicated region
  $region2: #{infonce_loss_forward.4} parent=0 // pred_check
    _
  $region3: #{infonce_loss_forward.4} parent=0 // pred_check_branch
    %10 = sbr.rel (0) target = $region5
  $region4: #{infonce_loss_forward.4} parent=0 // pred_region
    _
  $region5: #{infonce_loss_forward.4} parent=0 // pred_fallthru
    _
  // Predicated region
  $region6: #{infonce_loss_forward.4} parent=0 // pred_check
    _
  $region7: #{infonce_loss_forward.4} parent=0 // pred_check_branch
    %12 = sbr.rel (0) target = $region9
  $region8: #{infonce_loss_forward.4} parent=0 // pred_region
    _
  $region9: #{infonce_loss_forward.4} parent=0 // pred_fallthru
    _
  %v13 = vld [vmem:[%s0] sm:$0xff]
  %v14 = vld [vmem:[%s0 + $0x8] sm:$0xff]
  %v15 = vld [vmem:[%s0 + $0x10] sm:$0xff]
  %v16 = vld [vmem:[%s0 + $0x18] sm:$0xff]
  %v17 = vmul.f32 %v13, %v13
  %v18 = vmul.f32 %v14, %v14
  %v19 = vmul.f32 %v15, %v15
  %v20 = vmul.f32 %v16, %v16
  %v21 = vadd.f32 %v17, %v18
  %22 = vadd.xlane.f32.xlu0 %v21
  %v23 = vpop.xlane.xlu0 %22
  %v24 = vadd.f32 %v19, %v20
  %25 = vadd.xlane.f32.xlu0 %v24
  %v26 = vpop.xlane.xlu0 %25
  %v27 = vmax.f32 %v23, 1e-24
  %v28 = vmax.f32 %v26, 1e-24
  %v29 = vrsqrt.pop %v27
  %v30 = vmul.f32 %v29, %v27
  %v31 = vmul.f32 %v30, %v29
  %v32 = vmul.f32 0.5, %v31
  %v33 = vsub.f32 1.5, %v32
  %v34 = vmul.f32 %v29, %v33
  %vm35 = vweird.f32 %v27
  %vm36 = vweird.f32 %v29
  %vm37 = vmor %vm35, %vm36
  %v38 = vsel %vm37, %v29, %v34
  %v39 = vrsqrt.pop %v28
  %v40 = vmul.f32 %v39, %v28
  %v41 = vmul.f32 %v40, %v39
  %v42 = vmul.f32 0.5, %v41
  %v43 = vsub.f32 1.5, %v42
  %v44 = vmul.f32 %v39, %v43
  %vm45 = vweird.f32 %v28
  %vm46 = vweird.f32 %v39
  %vm47 = vmor %vm45, %vm46
  %v48 = vsel %vm47, %v39, %v44
  %v49 = vld [vmem:[#allocation2] sm:$0x1]
  %v51 = vperm.slane %v49, 0
  %v53 = vmul.f32 %v38, %v51
  %v54 = vmul.f32 %v48, %v51
  %56 = vset.pattern.permute.xlu0 0
  %57 = vperm.xlu0 %56, %v53
  %v58 = vpop.permute.xlu0 %57
  %61 = vset.pattern.permute.xlu0 0
  %62 = vperm.xlu0 %61, %v54
  %v63 = vpop.permute.xlu0 %62
  %v65 = vmul.f32 %v13, %v58
  %v66 = vmul.f32 %v14, %v58
  %v67 = vmul.f32 %v15, %v63
  %v68 = vmul.f32 %v16, %v63
  %v69 = vpack.c.bf16 %v66, %v65
  %v70 = vpack.c.bf16 %v68, %v67
  %71 = vst [vmem:[%s2] sm:$0xff] %v69
  %72 = vst [vmem:[%s2 + $0x8] sm:$0xff] %v70
  // Predicated region
  $region10: #{infonce_loss_forward.4} parent=0 // pred_check
    _
  $region11: #{infonce_loss_forward.4} parent=0 // pred_check_branch
    %74 = sbr.rel (0) target = $region13
  $region12: #{infonce_loss_forward.4} parent=0 // pred_region
    _
  $region13: #{infonce_loss_forward.4} parent=0 // pred_fallthru
    _
  // Predicated region
  $region14: #{infonce_loss_forward.4} parent=0 // pred_check
    _
  $region15: #{infonce_loss_forward.4} parent=0 // pred_check_branch
    %76 = sbr.rel (0) target = $region17
  $region16: #{infonce_loss_forward.4} parent=0 // pred_region
    _
  $region17: #{infonce_loss_forward.4} parent=0 // pred_fallthru
    _

// kernel: infonce_loss_forward.5
$region0: #{infonce_loss_forward.5}
  #allocation0 [shape = 'u32[]', space=smem, size = 0x4, offset = 0x4, fixed_abs, tag = 'smem constant byte address 0x4 - core index']
  #allocation1 [shape = 'u32[72,128]{1,0:T(1,128)}', space=vmem, size = 0x9000, scoped, tag = 'internal scratch']
  #allocation2 [shape = 'f32[1,1]{1,0:T(1,128)S(1)}', space=vmem, size = 0x200, scoped, tag = 'scoped memory for infonce_loss_forward.5']
  %s0 = inlined_call_operand.vmem [shape: f32[128,256], index: 0, kind: input, shape index: {}]
  %s1 = inlined_call_operand.<no memory space> [shape: f32[1,1], index: 1, kind: input, shape index: {}]
  %s2 = inlined_call_operand.vmem [shape: bf16[128,256], index: 2, kind: output, shape index: {}]
  %s3 = sld [smem:[#allocation0]]
  $region18: #{infonce_loss_forward.5} parent=0
    _
  %s5 = ssub.s32 1, %s3
  %s6 = scalar_select 0, %s5, %s3
  %v7 = vstv %s1
  %8 = vst [vmem:[#allocation2] sm:$0x1] %v7
  // Predicated region
  $region2: #{infonce_loss_forward.5} parent=0 // pred_check
    _
  $region3: #{infonce_loss_forward.5} parent=0 // pred_check_branch
    %10 = sbr.rel (0) target = $region5
  $region4: #{infonce_loss_forward.5} parent=0 // pred_region
    _
  $region5: #{infonce_loss_forward.5} parent=0 // pred_fallthru
    _
  // Predicated region
  $region6: #{infonce_loss_forward.5} parent=0 // pred_check
    _
  $region7: #{infonce_loss_forward.5} parent=0 // pred_check_branch
    %12 = sbr.rel (0) target = $region9
  $region8: #{infonce_loss_forward.5} parent=0 // pred_region
    _
  $region9: #{infonce_loss_forward.5} parent=0 // pred_fallthru
    _
  %v13 = vld [vmem:[%s0] sm:$0xff]
  %v14 = vld [vmem:[%s0 + $0x8] sm:$0xff]
  %v15 = vld [vmem:[%s0 + $0x10] sm:$0xff]
  %v16 = vld [vmem:[%s0 + $0x18] sm:$0xff]
  %v17 = vld [vmem:[%s0 + $0x20] sm:$0xff]
  %v18 = vld [vmem:[%s0 + $0x28] sm:$0xff]
  %v19 = vld [vmem:[%s0 + $0x30] sm:$0xff]
  %v20 = vld [vmem:[%s0 + $0x38] sm:$0xff]
  %v21 = vld [vmem:[%s0 + $0x40] sm:$0xff]
  %v22 = vld [vmem:[%s0 + $0x48] sm:$0xff]
  %v23 = vld [vmem:[%s0 + $0x50] sm:$0xff]
  %v24 = vld [vmem:[%s0 + $0x58] sm:$0xff]
  %v25 = vld [vmem:[%s0 + $0x60] sm:$0xff]
  %v26 = vld [vmem:[%s0 + $0x68] sm:$0xff]
  %v27 = vld [vmem:[%s0 + $0x70] sm:$0xff]
  %v28 = vld [vmem:[%s0 + $0x78] sm:$0xff]
  %v29 = vld [vmem:[%s0 + $0x80] sm:$0xff]
  %v30 = vld [vmem:[%s0 + $0x88] sm:$0xff]
  %v31 = vld [vmem:[%s0 + $0x90] sm:$0xff]
  %v32 = vld [vmem:[%s0 + $0x98] sm:$0xff]
  %v33 = vld [vmem:[%s0 + $0xa0] sm:$0xff]
  %v34 = vld [vmem:[%s0 + $0xa8] sm:$0xff]
  %v35 = vld [vmem:[%s0 + $0xb0] sm:$0xff]
  %v36 = vld [vmem:[%s0 + $0xb8] sm:$0xff]
  %v37 = vld [vmem:[%s0 + $0xc0] sm:$0xff]
  %v38 = vld [vmem:[%s0 + $0xc8] sm:$0xff]
  %v39 = vld [vmem:[%s0 + $0xd0] sm:$0xff]
  %v40 = vld [vmem:[%s0 + $0xd8] sm:$0xff]
  %v41 = vld [vmem:[%s0 + $0xe0] sm:$0xff]
  %v42 = vld [vmem:[%s0 + $0xe8] sm:$0xff]
  %v43 = vld [vmem:[%s0 + $0xf0] sm:$0xff]
  %v44 = vld [vmem:[%s0 + $0xf8] sm:$0xff]
  %v45 = vmul.f32 %v13, %v13
  %v46 = vmul.f32 %v14, %v14
  %v47 = vmul.f32 %v15, %v15
  %v48 = vmul.f32 %v16, %v16
  %v49 = vmul.f32 %v17, %v17
  %v50 = vmul.f32 %v18, %v18
  %v51 = vmul.f32 %v19, %v19
  %v52 = vmul.f32 %v20, %v20
  %v53 = vmul.f32 %v21, %v21
  %v54 = vmul.f32 %v22, %v22
  %v55 = vmul.f32 %v23, %v23
  %v56 = vmul.f32 %v24, %v24
  %v57 = vmul.f32 %v25, %v25
  %v58 = vmul.f32 %v26, %v26
  %v59 = vmul.f32 %v27, %v27
  %v60 = vmul.f32 %v28, %v28
  %v61 = vmul.f32 %v29, %v29
  %v62 = vmul.f32 %v30, %v30
  %v63 = vmul.f32 %v31, %v31
  %v64 = vmul.f32 %v32, %v32
  %v65 = vmul.f32 %v33, %v33
  %v66 = vmul.f32 %v34, %v34
  %v67 = vmul.f32 %v35, %v35
  %v68 = vmul.f32 %v36, %v36
  %v69 = vmul.f32 %v37, %v37
  %v70 = vmul.f32 %v38, %v38
  %v71 = vmul.f32 %v39, %v39
  %v72 = vmul.f32 %v40, %v40
  %v73 = vmul.f32 %v41, %v41
  %v74 = vmul.f32 %v42, %v42
  %v75 = vmul.f32 %v43, %v43
  %v76 = vmul.f32 %v44, %v44
  %v77 = vadd.f32 %v45, %v46
  %78 = vadd.xlane.f32.xlu0 %v77
  %v79 = vpop.xlane.xlu0 %78
  %v80 = vadd.f32 %v47, %v48
  %81 = vadd.xlane.f32.xlu0 %v80
  %v82 = vpop.xlane.xlu0 %81
  %v83 = vadd.f32 %v49, %v50
  %84 = vadd.xlane.f32.xlu0 %v83
  %v85 = vpop.xlane.xlu0 %84
  %v86 = vadd.f32 %v51, %v52
  %87 = vadd.xlane.f32.xlu0 %v86
  %v88 = vpop.xlane.xlu0 %87
  %v89 = vadd.f32 %v53, %v54
  %90 = vadd.xlane.f32.xlu0 %v89
  %v91 = vpop.xlane.xlu0 %90
  %v92 = vadd.f32 %v55, %v56
  %93 = vadd.xlane.f32.xlu0 %v92
  %v94 = vpop.xlane.xlu0 %93
  %v95 = vadd.f32 %v57, %v58
  %96 = vadd.xlane.f32.xlu0 %v95
  %v97 = vpop.xlane.xlu0 %96
  %v98 = vadd.f32 %v59, %v60
  %99 = vadd.xlane.f32.xlu0 %v98
  %v100 = vpop.xlane.xlu0 %99
  %v101 = vadd.f32 %v61, %v62
  %102 = vadd.xlane.f32.xlu0 %v101
  %v103 = vpop.xlane.xlu0 %102
  %v104 = vadd.f32 %v63, %v64
  %105 = vadd.xlane.f32.xlu0 %v104
  %v106 = vpop.xlane.xlu0 %105
  %v107 = vadd.f32 %v65, %v66
  %108 = vadd.xlane.f32.xlu0 %v107
  %v109 = vpop.xlane.xlu0 %108
  %v110 = vadd.f32 %v67, %v68
  %111 = vadd.xlane.f32.xlu0 %v110
  %v112 = vpop.xlane.xlu0 %111
  %v113 = vadd.f32 %v69, %v70
  %114 = vadd.xlane.f32.xlu0 %v113
  %v115 = vpop.xlane.xlu0 %114
  %v116 = vadd.f32 %v71, %v72
  %117 = vadd.xlane.f32.xlu0 %v116
  %v118 = vpop.xlane.xlu0 %117
  %v119 = vadd.f32 %v73, %v74
  %120 = vadd.xlane.f32.xlu0 %v119
  %v121 = vpop.xlane.xlu0 %120
  %v122 = vadd.f32 %v75, %v76
  %123 = vadd.xlane.f32.xlu0 %v122
  %v124 = vpop.xlane.xlu0 %123
  %v125 = vmax.f32 %v79, 1e-24
  %v126 = vmax.f32 %v82, 1e-24
  %v127 = vmax.f32 %v85, 1e-24
  %v128 = vmax.f32 %v88, 1e-24
  %v129 = vmax.f32 %v91, 1e-24
  %v130 = vmax.f32 %v94, 1e-24
  %v131 = vmax.f32 %v97, 1e-24
  %v132 = vmax.f32 %v100, 1e-24
  %v133 = vmax.f32 %v103, 1e-24
  %v134 = vmax.f32 %v106, 1e-24
  %v135 = vmax.f32 %v109, 1e-24
  %v136 = vmax.f32 %v112, 1e-24
  %v137 = vmax.f32 %v115, 1e-24
  %v138 = vmax.f32 %v118, 1e-24
  %v139 = vmax.f32 %v121, 1e-24
  %v140 = vmax.f32 %v124, 1e-24
  %v141 = vrsqrt.pop %v125
  %v142 = vmul.f32 %v141, %v125
  %v143 = vmul.f32 %v142, %v141
  %v144 = vmul.f32 0.5, %v143
  %v145 = vsub.f32 1.5, %v144
  %v146 = vmul.f32 %v141, %v145
  %vm147 = vweird.f32 %v125
  %vm148 = vweird.f32 %v141
  %vm149 = vmor %vm147, %vm148
  %v150 = vsel %vm149, %v141, %v146
  %v151 = vrsqrt.pop %v126
  %v152 = vmul.f32 %v151, %v126
  %v153 = vmul.f32 %v152, %v151
  %v154 = vmul.f32 0.5, %v153
  %v155 = vsub.f32 1.5, %v154
  %v156 = vmul.f32 %v151, %v155
  %vm157 = vweird.f32 %v126
  %vm158 = vweird.f32 %v151
  %vm159 = vmor %vm157, %vm158
  %v160 = vsel %vm159, %v151, %v156
  %v161 = vrsqrt.pop %v127
  %v162 = vmul.f32 %v161, %v127
  %v163 = vmul.f32 %v162, %v161
  %v164 = vmul.f32 0.5, %v163
  %v165 = vsub.f32 1.5, %v164
  %v166 = vmul.f32 %v161, %v165
  %vm167 = vweird.f32 %v127
  %vm168 = vweird.f32 %v161
  %vm169 = vmor %vm167, %vm168
  %v170 = vsel %vm169, %v161, %v166
  %v171 = vrsqrt.pop %v128
  %v172 = vmul.f32 %v171, %v128
  %v173 = vmul.f32 %v172, %v171
  %v174 = vmul.f32 0.5, %v173
  %v175 = vsub.f32 1.5, %v174
  %v176 = vmul.f32 %v171, %v175
  %vm177 = vweird.f32 %v128
  %vm178 = vweird.f32 %v171
  %vm179 = vmor %vm177, %vm178
  %v180 = vsel %vm179, %v171, %v176
  %v181 = vrsqrt.pop %v129
  %v182 = vmul.f32 %v181, %v129
  %v183 = vmul.f32 %v182, %v181
  %v184 = vmul.f32 0.5, %v183
  %v185 = vsub.f32 1.5, %v184
  %v186 = vmul.f32 %v181, %v185
  %vm187 = vweird.f32 %v129
  %vm188 = vweird.f32 %v181
  %vm189 = vmor %vm187, %vm188
  %v190 = vsel %vm189, %v181, %v186
  %v191 = vrsqrt.pop %v130
  %v192 = vmul.f32 %v191, %v130
  %v193 = vmul.f32 %v192, %v191
  %v194 = vmul.f32 0.5, %v193
  %v195 = vsub.f32 1.5, %v194
  %v196 = vmul.f32 %v191, %v195
  %vm197 = vweird.f32 %v130
  %vm198 = vweird.f32 %v191
  %vm199 = vmor %vm197, %vm198
  %v200 = vsel %vm199, %v191, %v196
  %v201 = vrsqrt.pop %v131
  %v202 = vmul.f32 %v201, %v131
  %v203 = vmul.f32 %v202, %v201
  %v204 = vmul.f32 0.5, %v203
  %v205 = vsub.f32 1.5, %v204
  %v206 = vmul.f32 %v201, %v205
  %vm207 = vweird.f32 %v131
  %vm208 = vweird.f32 %v201
  %vm209 = vmor %vm207, %vm208
  %v210 = vsel %vm209, %v201, %v206
  %v211 = vrsqrt.pop %v132
  %v212 = vmul.f32 %v211, %v132
  %v213 = vmul.f32 %v212, %v211
  %v214 = vmul.f32 0.5, %v213
  %v215 = vsub.f32 1.5, %v214
  %v216 = vmul.f32 %v211, %v215
  %vm217 = vweird.f32 %v132
  %vm218 = vweird.f32 %v211
  %vm219 = vmor %vm217, %vm218
  %v220 = vsel %vm219, %v211, %v216
  %v221 = vrsqrt.pop %v133
  %v222 = vmul.f32 %v221, %v133
  %v223 = vmul.f32 %v222, %v221
  %v224 = vmul.f32 0.5, %v223
  %v225 = vsub.f32 1.5, %v224
  %v226 = vmul.f32 %v221, %v225
  %vm227 = vweird.f32 %v133
  %vm228 = vweird.f32 %v221
  %vm229 = vmor %vm227, %vm228
  %v230 = vsel %vm229, %v221, %v226
  %v231 = vrsqrt.pop %v134
  %v232 = vmul.f32 %v231, %v134
  %v233 = vmul.f32 %v232, %v231
  %v234 = vmul.f32 0.5, %v233
  %v235 = vsub.f32 1.5, %v234
  %v236 = vmul.f32 %v231, %v235
  %vm237 = vweird.f32 %v134
  %vm238 = vweird.f32 %v231
  %vm239 = vmor %vm237, %vm238
  %v240 = vsel %vm239, %v231, %v236
  %v241 = vrsqrt.pop %v135
  %v242 = vmul.f32 %v241, %v135
  %v243 = vmul.f32 %v242, %v241
  %v244 = vmul.f32 0.5, %v243
  %v245 = vsub.f32 1.5, %v244
  %v246 = vmul.f32 %v241, %v245
  %vm247 = vweird.f32 %v135
  %vm248 = vweird.f32 %v241
  %vm249 = vmor %vm247, %vm248
  %v250 = vsel %vm249, %v241, %v246
  %v251 = vrsqrt.pop %v136
  %v252 = vmul.f32 %v251, %v136
  %v253 = vmul.f32 %v252, %v251
  %v254 = vmul.f32 0.5, %v253
  %v255 = vsub.f32 1.5, %v254
  %v256 = vmul.f32 %v251, %v255
  %vm257 = vweird.f32 %v136
  %vm258 = vweird.f32 %v251
  %vm259 = vmor %vm257, %vm258
  %v260 = vsel %vm259, %v251, %v256
  %v261 = vrsqrt.pop %v137
  %v262 = vmul.f32 %v261, %v137
  %v263 = vmul.f32 %v262, %v261
  %v264 = vmul.f32 0.5, %v263
  %v265 = vsub.f32 1.5, %v264
  %v266 = vmul.f32 %v261, %v265
  %vm267 = vweird.f32 %v137
  %vm268 = vweird.f32 %v261
  %vm269 = vmor %vm267, %vm268
  %v270 = vsel %vm269, %v261, %v266
  %v271 = vrsqrt.pop %v138
  %v272 = vmul.f32 %v271, %v138
  %v273 = vmul.f32 %v272, %v271
  %v274 = vmul.f32 0.5, %v273
  %v275 = vsub.f32 1.5, %v274
  %v276 = vmul.f32 %v271, %v275
  %vm277 = vweird.f32 %v138
  %vm278 = vweird.f32 %v271
  %vm279 = vmor %vm277, %vm278
  %v280 = vsel %vm279, %v271, %v276
  %v281 = vrsqrt.pop %v139
  %v282 = vmul.f32 %v281, %v139
  %v283 = vmul.f32 %v282, %v281
  %v284 = vmul.f32 0.5, %v283
  %v285 = vsub.f32 1.5, %v284
  %v286 = vmul.f32 %v281, %v285
  %vm287 = vweird.f32 %v139
  %vm288 = vweird.f32 %v281
  %vm289 = vmor %vm287, %vm288
  %v290 = vsel %vm289, %v281, %v286
  %v291 = vrsqrt.pop %v140
  %v292 = vmul.f32 %v291, %v140
  %v293 = vmul.f32 %v292, %v291
  %v294 = vmul.f32 0.5, %v293
  %v295 = vsub.f32 1.5, %v294
  %v296 = vmul.f32 %v291, %v295
  %vm297 = vweird.f32 %v140
  %vm298 = vweird.f32 %v291
  %vm299 = vmor %vm297, %vm298
  %v300 = vsel %vm299, %v291, %v296
  %v301 = vld [vmem:[#allocation2] sm:$0x1]
  %v303 = vperm.slane %v301, 0
  %v305 = vmul.f32 %v150, %v303
  %v306 = vmul.f32 %v160, %v303
  %v307 = vmul.f32 %v170, %v303
  %v308 = vmul.f32 %v180, %v303
  %v309 = vmul.f32 %v190, %v303
  %v310 = vmul.f32 %v200, %v303
  %v311 = vmul.f32 %v210, %v303
  %v312 = vmul.f32 %v220, %v303
  %v313 = vmul.f32 %v230, %v303
  %v314 = vmul.f32 %v240, %v303
  %v315 = vmul.f32 %v250, %v303
  %v316 = vmul.f32 %v260, %v303
  %v317 = vmul.f32 %v270, %v303
  %v318 = vmul.f32 %v280, %v303
  %v319 = vmul.f32 %v290, %v303
  %v320 = vmul.f32 %v300, %v303
  %322 = vset.pattern.permute.xlu0 0
  %323 = vperm.xlu0 %322, %v305
  %v324 = vpop.permute.xlu0 %323
  %327 = vset.pattern.permute.xlu0 0
  %328 = vperm.xlu0 %327, %v306
  %v329 = vpop.permute.xlu0 %328
  %332 = vset.pattern.permute.xlu0 0
  %333 = vperm.xlu0 %332, %v307
  %v334 = vpop.permute.xlu0 %333
  %337 = vset.pattern.permute.xlu0 0
  %338 = vperm.xlu0 %337, %v308
  %v339 = vpop.permute.xlu0 %338
  %342 = vset.pattern.permute.xlu0 0
  %343 = vperm.xlu0 %342, %v309
  %v344 = vpop.permute.xlu0 %343
  %347 = vset.pattern.permute.xlu0 0
  %348 = vperm.xlu0 %347, %v310
  %v349 = vpop.permute.xlu0 %348
  %352 = vset.pattern.permute.xlu0 0
  %353 = vperm.xlu0 %352, %v311
  %v354 = vpop.permute.xlu0 %353
  %357 = vset.pattern.permute.xlu0 0
  %358 = vperm.xlu0 %357, %v312
  %v359 = vpop.permute.xlu0 %358
  %362 = vset.pattern.permute.xlu0 0
  %363 = vperm.xlu0 %362, %v313
  %v364 = vpop.permute.xlu0 %363
  %367 = vset.pattern.permute.xlu0 0
  %368 = vperm.xlu0 %367, %v314
  %v369 = vpop.permute.xlu0 %368
  %372 = vset.pattern.permute.xlu0 0
  %373 = vperm.xlu0 %372, %v315
  %v374 = vpop.permute.xlu0 %373
  %377 = vset.pattern.permute.xlu0 0
  %378 = vperm.xlu0 %377, %v316
  %v379 = vpop.permute.xlu0 %378
  %382 = vset.pattern.permute.xlu0 0
  %383 = vperm.xlu0 %382, %v317
  %v384 = vpop.permute.xlu0 %383
  %387 = vset.pattern.permute.xlu0 0
  %388 = vperm.xlu0 %387, %v318
  %v389 = vpop.permute.xlu0 %388
  %392 = vset.pattern.permute.xlu0 0
  %393 = vperm.xlu0 %392, %v319
  %v394 = vpop.permute.xlu0 %393
  %397 = vset.pattern.permute.xlu0 0
  %398 = vperm.xlu0 %397, %v320
  %v399 = vpop.permute.xlu0 %398
  %v401 = vmul.f32 %v13, %v324
  %v402 = vmul.f32 %v14, %v324
  %v403 = vmul.f32 %v15, %v329
  %v404 = vmul.f32 %v16, %v329
  %v405 = vmul.f32 %v17, %v334
  %v406 = vmul.f32 %v18, %v334
  %v407 = vmul.f32 %v19, %v339
  %v408 = vmul.f32 %v20, %v339
  %v409 = vmul.f32 %v21, %v344
  %v410 = vmul.f32 %v22, %v344
  %v411 = vmul.f32 %v23, %v349
  %v412 = vmul.f32 %v24, %v349
  %v413 = vmul.f32 %v25, %v354
  %v414 = vmul.f32 %v26, %v354
  %v415 = vmul.f32 %v27, %v359
  %v416 = vmul.f32 %v28, %v359
  %v417 = vmul.f32 %v29, %v364
  %v418 = vmul.f32 %v30, %v364
  %v419 = vmul.f32 %v31, %v369
  %v420 = vmul.f32 %v32, %v369
  %v421 = vmul.f32 %v33, %v374
  %v422 = vmul.f32 %v34, %v374
  %v423 = vmul.f32 %v35, %v379
  %v424 = vmul.f32 %v36, %v379
  %v425 = vmul.f32 %v37, %v384
  %v426 = vmul.f32 %v38, %v384
  %v427 = vmul.f32 %v39, %v389
  %v428 = vmul.f32 %v40, %v389
  %v429 = vmul.f32 %v41, %v394
  %v430 = vmul.f32 %v42, %v394
  %v431 = vmul.f32 %v43, %v399
  %v432 = vmul.f32 %v44, %v399
  %v433 = vpack.c.bf16 %v402, %v401
  %v434 = vpack.c.bf16 %v404, %v403
  %v435 = vpack.c.bf16 %v406, %v405
  %v436 = vpack.c.bf16 %v408, %v407
  %v437 = vpack.c.bf16 %v410, %v409
  %v438 = vpack.c.bf16 %v412, %v411
  %v439 = vpack.c.bf16 %v414, %v413
  %v440 = vpack.c.bf16 %v416, %v415
  %v441 = vpack.c.bf16 %v418, %v417
  %v442 = vpack.c.bf16 %v420, %v419
  %v443 = vpack.c.bf16 %v422, %v421
  %v444 = vpack.c.bf16 %v424, %v423
  %v445 = vpack.c.bf16 %v426, %v425
  %v446 = vpack.c.bf16 %v428, %v427
  %v447 = vpack.c.bf16 %v430, %v429
  %v448 = vpack.c.bf16 %v432, %v431
  %449 = vst [vmem:[%s2] sm:$0xff] %v433
  %450 = vst [vmem:[%s2 + $0x8] sm:$0xff] %v434
  %451 = vst [vmem:[%s2 + $0x10] sm:$0xff] %v435
  %452 = vst [vmem:[%s2 + $0x18] sm:$0xff] %v436
  %453 = vst [vmem:[%s2 + $0x20] sm:$0xff] %v437
  %454 = vst [vmem:[%s2 + $0x28] sm:$0xff] %v438
  %455 = vst [vmem:[%s2 + $0x30] sm:$0xff] %v439
  %456 = vst [vmem:[%s2 + $0x38] sm:$0xff] %v440
  %457 = vst [vmem:[%s2 + $0x40] sm:$0xff] %v441
  %458 = vst [vmem:[%s2 + $0x48] sm:$0xff] %v442
  %459 = vst [vmem:[%s2 + $0x50] sm:$0xff] %v443
  %460 = vst [vmem:[%s2 + $0x58] sm:$0xff] %v444
  %461 = vst [vmem:[%s2 + $0x60] sm:$0xff] %v445
  %462 = vst [vmem:[%s2 + $0x68] sm:$0xff] %v446
  %463 = vst [vmem:[%s2 + $0x70] sm:$0xff] %v447
  %464 = vst [vmem:[%s2 + $0x78] sm:$0xff] %v448
  // Predicated region
  $region10: #{infonce_loss_forward.5} parent=0 // pred_check
    _
  $region11: #{infonce_loss_forward.5} parent=0 // pred_check_branch
    %466 = sbr.rel (0) target = $region13
  $region12: #{infonce_loss_forward.5} parent=0 // pred_region
    _
  $region13: #{infonce_loss_forward.5} parent=0 // pred_fallthru
    _
  // Predicated region
  $region14: #{infonce_loss_forward.5} parent=0 // pred_check
    _
  $region15: #{infonce_loss_forward.5} parent=0 // pred_check_branch
    %468 = sbr.rel (0) target = $region17
  $region16: #{infonce_loss_forward.5} parent=0 // pred_region
    _
  $region17: #{infonce_loss_forward.5} parent=0 // pred_fallthru
    _

// kernel: infonce_loss_forward.7
$region0: #{infonce_loss_forward.7}
  #allocation0 [shape = 'u32[]', space=smem, size = 0x4, offset = 0x4, fixed_abs, tag = 'smem constant byte address 0x4 - core index']
  #allocation1 [shape = 'u32[72,128]{1,0:T(1,128)}', space=vmem, size = 0x9000, scoped, tag = 'internal scratch']
  %s0 = inlined_call_operand.vmem [shape: f32[16,256], index: 0, kind: input, shape index: {}]
  %s1 = inlined_call_operand.vmem [shape: f32[128,256], index: 1, kind: input, shape index: {}]
  %s2 = inlined_call_operand.vmem [shape: f32[16,128], index: 2, kind: output, shape index: {}]
  %s3 = sld [smem:[#allocation0]]
  $region18: #{infonce_loss_forward.7} parent=0
    _
  %s5 = ssub.s32 1, %s3
  %s6 = scalar_select 0, %s5, %s3
  // Predicated region
  $region2: #{infonce_loss_forward.7} parent=0 // pred_check
    _
  $region3: #{infonce_loss_forward.7} parent=0 // pred_check_branch
    %8 = sbr.rel (0) target = $region5
  $region4: #{infonce_loss_forward.7} parent=0 // pred_region
    _
  $region5: #{infonce_loss_forward.7} parent=0 // pred_fallthru
    _
  // Predicated region
  $region6: #{infonce_loss_forward.7} parent=0 // pred_check
    _
  $region7: #{infonce_loss_forward.7} parent=0 // pred_check_branch
    %10 = sbr.rel (0) target = $region9
  $region8: #{infonce_loss_forward.7} parent=0 // pred_region
    _
  $region9: #{infonce_loss_forward.7} parent=0 // pred_fallthru
    _
  %v11 = vld [vmem:[%s0] sm:$0xff]
  %v12 = vld [vmem:[%s0 + $0x8] sm:$0xff]
  %v13 = vld [vmem:[%s0 + $0x10] sm:$0xff]
  %v14 = vld [vmem:[%s0 + $0x18] sm:$0xff]
  %v15 = vld [vmem:[%s1] sm:$0xff]
  %v16 = vld [vmem:[%s1 + $0x8] sm:$0xff]
  %v17 = vld [vmem:[%s1 + $0x10] sm:$0xff]
  %v18 = vld [vmem:[%s1 + $0x18] sm:$0xff]
  %v19 = vld [vmem:[%s1 + $0x20] sm:$0xff]
  %v20 = vld [vmem:[%s1 + $0x28] sm:$0xff]
  %v21 = vld [vmem:[%s1 + $0x30] sm:$0xff]
  %v22 = vld [vmem:[%s1 + $0x38] sm:$0xff]
  %v23 = vld [vmem:[%s1 + $0x40] sm:$0xff]
  %v24 = vld [vmem:[%s1 + $0x48] sm:$0xff]
  %v25 = vld [vmem:[%s1 + $0x50] sm:$0xff]
  %v26 = vld [vmem:[%s1 + $0x58] sm:$0xff]
  %v27 = vld [vmem:[%s1 + $0x60] sm:$0xff]
  %v28 = vld [vmem:[%s1 + $0x68] sm:$0xff]
  %v29 = vld [vmem:[%s1 + $0x70] sm:$0xff]
  %v30 = vld [vmem:[%s1 + $0x78] sm:$0xff]
  %v31 = vld [vmem:[%s1 + $0x80] sm:$0xff]
  %v32 = vld [vmem:[%s1 + $0x88] sm:$0xff]
  %v33 = vld [vmem:[%s1 + $0x90] sm:$0xff]
  %v34 = vld [vmem:[%s1 + $0x98] sm:$0xff]
  %v35 = vld [vmem:[%s1 + $0xa0] sm:$0xff]
  %v36 = vld [vmem:[%s1 + $0xa8] sm:$0xff]
  %v37 = vld [vmem:[%s1 + $0xb0] sm:$0xff]
  %v38 = vld [vmem:[%s1 + $0xb8] sm:$0xff]
  %v39 = vld [vmem:[%s1 + $0xc0] sm:$0xff]
  %v40 = vld [vmem:[%s1 + $0xc8] sm:$0xff]
  %v41 = vld [vmem:[%s1 + $0xd0] sm:$0xff]
  %v42 = vld [vmem:[%s1 + $0xd8] sm:$0xff]
  %v43 = vld [vmem:[%s1 + $0xe0] sm:$0xff]
  %v44 = vld [vmem:[%s1 + $0xe8] sm:$0xff]
  %v45 = vld [vmem:[%s1 + $0xf0] sm:$0xff]
  %v46 = vld [vmem:[%s1 + $0xf8] sm:$0xff]
  %v47 = vmul.f32 %v11, %v11
  %v48 = vmul.f32 %v12, %v12
  %v49 = vmul.f32 %v13, %v13
  %v50 = vmul.f32 %v14, %v14
  %v51 = vadd.f32 %v47, %v48
  %52 = vadd.xlane.f32.xlu0 %v51
  %v53 = vpop.xlane.xlu0 %52
  %v54 = vadd.f32 %v49, %v50
  %55 = vadd.xlane.f32.xlu0 %v54
  %v56 = vpop.xlane.xlu0 %55
  %v57 = vmax.f32 %v53, 1e-24
  %v58 = vmax.f32 %v56, 1e-24
  %v59 = vrsqrt.pop %v57
  %v60 = vmul.f32 %v59, %v57
  %v61 = vmul.f32 %v60, %v59
  %v62 = vmul.f32 0.5, %v61
  %v63 = vsub.f32 1.5, %v62
  %v64 = vmul.f32 %v59, %v63
  %vm65 = vweird.f32 %v57
  %vm66 = vweird.f32 %v59
  %vm67 = vmor %vm65, %vm66
  %v68 = vsel %vm67, %v59, %v64
  %v69 = vrsqrt.pop %v58
  %v70 = vmul.f32 %v69, %v58
  %v71 = vmul.f32 %v70, %v69
  %v72 = vmul.f32 0.5, %v71
  %v73 = vsub.f32 1.5, %v72
  %v74 = vmul.f32 %v69, %v73
  %vm75 = vweird.f32 %v58
  %vm76 = vweird.f32 %v69
  %vm77 = vmor %vm75, %vm76
  %v78 = vsel %vm77, %v69, %v74
  %v79 = vmul.f32 %v11, %v68
  %v80 = vmul.f32 %v12, %v68
  %v81 = vmul.f32 %v13, %v78
  %v82 = vmul.f32 %v14, %v78
  %v83 = vpack.c.bf16 %v81, %v79
  %v84 = vpack.c.bf16 %v82, %v80
  %v85 = vmul.f32 %v15, %v15
  %v86 = vmul.f32 %v16, %v16
  %v87 = vmul.f32 %v17, %v17
  %v88 = vmul.f32 %v18, %v18
  %v89 = vmul.f32 %v19, %v19
  %v90 = vmul.f32 %v20, %v20
  %v91 = vmul.f32 %v21, %v21
  %v92 = vmul.f32 %v22, %v22
  %v93 = vmul.f32 %v23, %v23
  %v94 = vmul.f32 %v24, %v24
  %v95 = vmul.f32 %v25, %v25
  %v96 = vmul.f32 %v26, %v26
  %v97 = vmul.f32 %v27, %v27
  %v98 = vmul.f32 %v28, %v28
  %v99 = vmul.f32 %v29, %v29
  %v100 = vmul.f32 %v30, %v30
  %v101 = vmul.f32 %v31, %v31
  %v102 = vmul.f32 %v32, %v32
  %v103 = vmul.f32 %v33, %v33
  %v104 = vmul.f32 %v34, %v34
  %v105 = vmul.f32 %v35, %v35
  %v106 = vmul.f32 %v36, %v36
  %v107 = vmul.f32 %v37, %v37
  %v108 = vmul.f32 %v38, %v38
  %v109 = vmul.f32 %v39, %v39
  %v110 = vmul.f32 %v40, %v40
  %v111 = vmul.f32 %v41, %v41
  %v112 = vmul.f32 %v42, %v42
  %v113 = vmul.f32 %v43, %v43
  %v114 = vmul.f32 %v44, %v44
  %v115 = vmul.f32 %v45, %v45
  %v116 = vmul.f32 %v46, %v46
  %v117 = vadd.f32 %v85, %v86
  %118 = vadd.xlane.f32.xlu0 %v117
  %v119 = vpop.xlane.xlu0 %118
  %v120 = vadd.f32 %v87, %v88
  %121 = vadd.xlane.f32.xlu0 %v120
  %v122 = vpop.xlane.xlu0 %121
  %v123 = vadd.f32 %v89, %v90
  %124 = vadd.xlane.f32.xlu0 %v123
  %v125 = vpop.xlane.xlu0 %124
  %v126 = vadd.f32 %v91, %v92
  %127 = vadd.xlane.f32.xlu0 %v126
  %v128 = vpop.xlane.xlu0 %127
  %v129 = vadd.f32 %v93, %v94
  %130 = vadd.xlane.f32.xlu0 %v129
  %v131 = vpop.xlane.xlu0 %130
  %v132 = vadd.f32 %v95, %v96
  %133 = vadd.xlane.f32.xlu0 %v132
  %v134 = vpop.xlane.xlu0 %133
  %v135 = vadd.f32 %v97, %v98
  %136 = vadd.xlane.f32.xlu0 %v135
  %v137 = vpop.xlane.xlu0 %136
  %v138 = vadd.f32 %v99, %v100
  %139 = vadd.xlane.f32.xlu0 %v138
  %v140 = vpop.xlane.xlu0 %139
  %v141 = vadd.f32 %v101, %v102
  %142 = vadd.xlane.f32.xlu0 %v141
  %v143 = vpop.xlane.xlu0 %142
  %v144 = vadd.f32 %v103, %v104
  %145 = vadd.xlane.f32.xlu0 %v144
  %v146 = vpop.xlane.xlu0 %145
  %v147 = vadd.f32 %v105, %v106
  %148 = vadd.xlane.f32.xlu0 %v147
  %v149 = vpop.xlane.xlu0 %148
  %v150 = vadd.f32 %v107, %v108
  %151 = vadd.xlane.f32.xlu0 %v150
  %v152 = vpop.xlane.xlu0 %151
  %v153 = vadd.f32 %v109, %v110
  %154 = vadd.xlane.f32.xlu0 %v153
  %v155 = vpop.xlane.xlu0 %154
  %v156 = vadd.f32 %v111, %v112
  %157 = vadd.xlane.f32.xlu0 %v156
  %v158 = vpop.xlane.xlu0 %157
  %v159 = vadd.f32 %v113, %v114
  %160 = vadd.xlane.f32.xlu0 %v159
  %v161 = vpop.xlane.xlu0 %160
  %v162 = vadd.f32 %v115, %v116
  %163 = vadd.xlane.f32.xlu0 %v162
  %v164 = vpop.xlane.xlu0 %163
  %v165 = vmax.f32 %v119, 1e-24
  %v166 = vmax.f32 %v122, 1e-24
  %v167 = vmax.f32 %v125, 1e-24
  %v168 = vmax.f32 %v128, 1e-24
  %v169 = vmax.f32 %v131, 1e-24
  %v170 = vmax.f32 %v134, 1e-24
  %v171 = vmax.f32 %v137, 1e-24
  %v172 = vmax.f32 %v140, 1e-24
  %v173 = vmax.f32 %v143, 1e-24
  %v174 = vmax.f32 %v146, 1e-24
  %v175 = vmax.f32 %v149, 1e-24
  %v176 = vmax.f32 %v152, 1e-24
  %v177 = vmax.f32 %v155, 1e-24
  %v178 = vmax.f32 %v158, 1e-24
  %v179 = vmax.f32 %v161, 1e-24
  %v180 = vmax.f32 %v164, 1e-24
  %v181 = vrsqrt.pop %v165
  %v182 = vmul.f32 %v181, %v165
  %v183 = vmul.f32 %v182, %v181
  %v184 = vmul.f32 0.5, %v183
  %v185 = vsub.f32 1.5, %v184
  %v186 = vmul.f32 %v181, %v185
  %vm187 = vweird.f32 %v165
  %vm188 = vweird.f32 %v181
  %vm189 = vmor %vm187, %vm188
  %v190 = vsel %vm189, %v181, %v186
  %v191 = vrsqrt.pop %v166
  %v192 = vmul.f32 %v191, %v166
  %v193 = vmul.f32 %v192, %v191
  %v194 = vmul.f32 0.5, %v193
  %v195 = vsub.f32 1.5, %v194
  %v196 = vmul.f32 %v191, %v195
  %vm197 = vweird.f32 %v166
  %vm198 = vweird.f32 %v191
  %vm199 = vmor %vm197, %vm198
  %v200 = vsel %vm199, %v191, %v196
  %v201 = vrsqrt.pop %v167
  %v202 = vmul.f32 %v201, %v167
  %v203 = vmul.f32 %v202, %v201
  %v204 = vmul.f32 0.5, %v203
  %v205 = vsub.f32 1.5, %v204
  %v206 = vmul.f32 %v201, %v205
  %vm207 = vweird.f32 %v167
  %vm208 = vweird.f32 %v201
  %vm209 = vmor %vm207, %vm208
  %v210 = vsel %vm209, %v201, %v206
  %v211 = vrsqrt.pop %v168
  %v212 = vmul.f32 %v211, %v168
  %v213 = vmul.f32 %v212, %v211
  %v214 = vmul.f32 0.5, %v213
  %v215 = vsub.f32 1.5, %v214
  %v216 = vmul.f32 %v211, %v215
  %vm217 = vweird.f32 %v168
  %vm218 = vweird.f32 %v211
  %vm219 = vmor %vm217, %vm218
  %v220 = vsel %vm219, %v211, %v216
  %v221 = vrsqrt.pop %v169
  %v222 = vmul.f32 %v221, %v169
  %v223 = vmul.f32 %v222, %v221
  %v224 = vmul.f32 0.5, %v223
  %v225 = vsub.f32 1.5, %v224
  %v226 = vmul.f32 %v221, %v225
  %vm227 = vweird.f32 %v169
  %vm228 = vweird.f32 %v221
  %vm229 = vmor %vm227, %vm228
  %v230 = vsel %vm229, %v221, %v226
  %v231 = vrsqrt.pop %v170
  %v232 = vmul.f32 %v231, %v170
  %v233 = vmul.f32 %v232, %v231
  %v234 = vmul.f32 0.5, %v233
  %v235 = vsub.f32 1.5, %v234
  %v236 = vmul.f32 %v231, %v235
  %vm237 = vweird.f32 %v170
  %vm238 = vweird.f32 %v231
  %vm239 = vmor %vm237, %vm238
  %v240 = vsel %vm239, %v231, %v236
  %v241 = vrsqrt.pop %v171
  %v242 = vmul.f32 %v241, %v171
  %v243 = vmul.f32 %v242, %v241
  %v244 = vmul.f32 0.5, %v243
  %v245 = vsub.f32 1.5, %v244
  %v246 = vmul.f32 %v241, %v245
  %vm247 = vweird.f32 %v171
  %vm248 = vweird.f32 %v241
  %vm249 = vmor %vm247, %vm248
  %v250 = vsel %vm249, %v241, %v246
  %v251 = vrsqrt.pop %v172
  %v252 = vmul.f32 %v251, %v172
  %v253 = vmul.f32 %v252, %v251
  %v254 = vmul.f32 0.5, %v253
  %v255 = vsub.f32 1.5, %v254
  %v256 = vmul.f32 %v251, %v255
  %vm257 = vweird.f32 %v172
  %vm258 = vweird.f32 %v251
  %vm259 = vmor %vm257, %vm258
  %v260 = vsel %vm259, %v251, %v256
  %v261 = vrsqrt.pop %v173
  %v262 = vmul.f32 %v261, %v173
  %v263 = vmul.f32 %v262, %v261
  %v264 = vmul.f32 0.5, %v263
  %v265 = vsub.f32 1.5, %v264
  %v266 = vmul.f32 %v261, %v265
  %vm267 = vweird.f32 %v173
  %vm268 = vweird.f32 %v261
  %vm269 = vmor %vm267, %vm268
  %v270 = vsel %vm269, %v261, %v266
  %v271 = vrsqrt.pop %v174
  %v272 = vmul.f32 %v271, %v174
  %v273 = vmul.f32 %v272, %v271
  %v274 = vmul.f32 0.5, %v273
  %v275 = vsub.f32 1.5, %v274
  %v276 = vmul.f32 %v271, %v275
  %vm277 = vweird.f32 %v174
  %vm278 = vweird.f32 %v271
  %vm279 = vmor %vm277, %vm278
  %v280 = vsel %vm279, %v271, %v276
  %v281 = vrsqrt.pop %v175
  %v282 = vmul.f32 %v281, %v175
  %v283 = vmul.f32 %v282, %v281
  %v284 = vmul.f32 0.5, %v283
  %v285 = vsub.f32 1.5, %v284
  %v286 = vmul.f32 %v281, %v285
  %vm287 = vweird.f32 %v175
  %vm288 = vweird.f32 %v281
  %vm289 = vmor %vm287, %vm288
  %v290 = vsel %vm289, %v281, %v286
  %v291 = vrsqrt.pop %v176
  %v292 = vmul.f32 %v291, %v176
  %v293 = vmul.f32 %v292, %v291
  %v294 = vmul.f32 0.5, %v293
  %v295 = vsub.f32 1.5, %v294
  %v296 = vmul.f32 %v291, %v295
  %vm297 = vweird.f32 %v176
  %vm298 = vweird.f32 %v291
  %vm299 = vmor %vm297, %vm298
  %v300 = vsel %vm299, %v291, %v296
  %v301 = vrsqrt.pop %v177
  %v302 = vmul.f32 %v301, %v177
  %v303 = vmul.f32 %v302, %v301
  %v304 = vmul.f32 0.5, %v303
  %v305 = vsub.f32 1.5, %v304
  %v306 = vmul.f32 %v301, %v305
  %vm307 = vweird.f32 %v177
  %vm308 = vweird.f32 %v301
  %vm309 = vmor %vm307, %vm308
  %v310 = vsel %vm309, %v301, %v306
  %v311 = vrsqrt.pop %v178
  %v312 = vmul.f32 %v311, %v178
  %v313 = vmul.f32 %v312, %v311
  %v314 = vmul.f32 0.5, %v313
  %v315 = vsub.f32 1.5, %v314
  %v316 = vmul.f32 %v311, %v315
  %vm317 = vweird.f32 %v178
  %vm318 = vweird.f32 %v311
  %vm319 = vmor %vm317, %vm318
  %v320 = vsel %vm319, %v311, %v316
  %v321 = vrsqrt.pop %v179
  %v322 = vmul.f32 %v321, %v179
  %v323 = vmul.f32 %v322, %v321
  %v324 = vmul.f32 0.5, %v323
  %v325 = vsub.f32 1.5, %v324
  %v326 = vmul.f32 %v321, %v325
  %vm327 = vweird.f32 %v179
  %vm328 = vweird.f32 %v321
  %vm329 = vmor %vm327, %vm328
  %v330 = vsel %vm329, %v321, %v326
  %v331 = vrsqrt.pop %v180
  %v332 = vmul.f32 %v331, %v180
  %v333 = vmul.f32 %v332, %v331
  %v334 = vmul.f32 0.5, %v333
  %v335 = vsub.f32 1.5, %v334
  %v336 = vmul.f32 %v331, %v335
  %vm337 = vweird.f32 %v180
  %vm338 = vweird.f32 %v331
  %vm339 = vmor %vm337, %vm338
  %v340 = vsel %vm339, %v331, %v336
  %v341 = vmul.f32 %v15, %v190
  %v342 = vmul.f32 %v16, %v190
  %v343 = vmul.f32 %v17, %v200
  %v344 = vmul.f32 %v18, %v200
  %v345 = vmul.f32 %v19, %v210
  %v346 = vmul.f32 %v20, %v210
  %v347 = vmul.f32 %v21, %v220
  %v348 = vmul.f32 %v22, %v220
  %v349 = vmul.f32 %v23, %v230
  %v350 = vmul.f32 %v24, %v230
  %v351 = vmul.f32 %v25, %v240
  %v352 = vmul.f32 %v26, %v240
  %v353 = vmul.f32 %v27, %v250
  %v354 = vmul.f32 %v28, %v250
  %v355 = vmul.f32 %v29, %v260
  %v356 = vmul.f32 %v30, %v260
  %v357 = vmul.f32 %v31, %v270
  %v358 = vmul.f32 %v32, %v270
  %v359 = vmul.f32 %v33, %v280
  %v360 = vmul.f32 %v34, %v280
  %v361 = vmul.f32 %v35, %v290
  %v362 = vmul.f32 %v36, %v290
  %v363 = vmul.f32 %v37, %v300
  %v364 = vmul.f32 %v38, %v300
  %v365 = vmul.f32 %v39, %v310
  %v366 = vmul.f32 %v40, %v310
  %v367 = vmul.f32 %v41, %v320
  %v368 = vmul.f32 %v42, %v320
  %v369 = vmul.f32 %v43, %v330
  %v370 = vmul.f32 %v44, %v330
  %v371 = vmul.f32 %v45, %v340
  %v372 = vmul.f32 %v46, %v340
  %v373 = vpack.c.bf16 %v343, %v341
  %v374 = vpack.c.bf16 %v344, %v342
  %v375 = vpack.c.bf16 %v347, %v345
  %v376 = vpack.c.bf16 %v348, %v346
  %v377 = vpack.c.bf16 %v351, %v349
  %v378 = vpack.c.bf16 %v352, %v350
  %v379 = vpack.c.bf16 %v355, %v353
  %v380 = vpack.c.bf16 %v356, %v354
  %v381 = vpack.c.bf16 %v359, %v357
  %v382 = vpack.c.bf16 %v360, %v358
  %v383 = vpack.c.bf16 %v363, %v361
  %v384 = vpack.c.bf16 %v364, %v362
  %v385 = vpack.c.bf16 %v367, %v365
  %v386 = vpack.c.bf16 %v368, %v366
  %v387 = vpack.c.bf16 %v371, %v369
  %v388 = vpack.c.bf16 %v372, %v370
  %389 = vmatpush.bf16.xpose.msra.mxu0 %v387
  %390 = vmatpush.bf16.xpose.msra.mxu0 %v385
  %391 = vmatpush.bf16.xpose.msra.mxu0 %v383
  %392 = vmatpush.bf16.xpose.msra.mxu0 %v381
  %393 = vmatpush.bf16.xpose.msra.mxu0 %v379
  %394 = vmatpush.bf16.xpose.msra.mxu0 %v377
  %395 = vmatpush.bf16.xpose.msra.mxu0 %v375
  %396 = vmatpush.bf16.xpose.msra.mxu0 %v373
  %397 = vmatmul.bf16.gmra.mxu0 %v83
  %v398 = vpop.f32.mrf.mxu0
  %v399 = vadd.f32 0.0, %v398
  %v400 = vpop.f32.mrf.mxu0
  %v401 = vadd.f32 0.0, %v400
  %402 = vdwg.mxu0
  %403 = vmatpush.bf16.xpose.msra.mxu0 %v388
  %404 = vmatpush.bf16.xpose.msra.mxu0 %v386
  %405 = vmatpush.bf16.xpose.msra.mxu0 %v384
  %406 = vmatpush.bf16.xpose.msra.mxu0 %v382
  %407 = vmatpush.bf16.xpose.msra.mxu0 %v380
  %408 = vmatpush.bf16.xpose.msra.mxu0 %v378
  %409 = vmatpush.bf16.xpose.msra.mxu0 %v376
  %410 = vmatpush.bf16.xpose.msra.mxu0 %v374
  %411 = vmatmul.bf16.gmra.mxu0 %v84
  %v412 = vpop.f32.mrf.mxu0
  %v413 = vadd.f32 %v399, %v412
  %v414 = vpop.f32.mrf.mxu0
  %v415 = vadd.f32 %v401, %v414
  %416 = vdwg.mxu0
  %417 = vst [vmem:[%s2] sm:$0xff] %v413
  %418 = vst [vmem:[%s2 + $0x8] sm:$0xff] %v415
  // Predicated region
  $region10: #{infonce_loss_forward.7} parent=0 // pred_check
    _
  $region11: #{infonce_loss_forward.7} parent=0 // pred_check_branch
    %420 = sbr.rel (0) target = $region13
  $region12: #{infonce_loss_forward.7} parent=0 // pred_region
    _
  $region13: #{infonce_loss_forward.7} parent=0 // pred_fallthru
    _
  // Predicated region
  $region14: #{infonce_loss_forward.7} parent=0 // pred_check
    _
  $region15: #{infonce_loss_forward.7} parent=0 // pred_check_branch
    %422 = sbr.rel (0) target = $region17
  $region16: #{infonce_loss_forward.7} parent=0 // pred_region
    _
  $region17: #{infonce_loss_forward.7} parent=0 // pred_fallthru
    _

// kernel: infonce_loss_forward.6
$region0: #{infonce_loss_forward.6}
  #allocation0 [shape = 'u32[]', space=smem, size = 0x4, offset = 0x4, fixed_abs, tag = 'smem constant byte address 0x4 - core index']
  #allocation1 [shape = 'u32[72,128]{1,0:T(1,128)}', space=vmem, size = 0x9000, scoped, tag = 'internal scratch']
  #allocation2 [shape = 'f32[16,1]{1,0:T(8,128)}', space=vmem, size = 0x2000, scoped, tag = 'scratch operand']
  #allocation3 [shape = 'f32[16,1]{1,0:T(8,128)}', space=vmem, size = 0x2000, scoped, tag = 'scratch operand']
  #allocation4 [shape = 'f32[16,1]{1,0:T(8,128)}', space=vmem, size = 0x2000, scoped, tag = 'scratch operand']
  #allocation5 [shape = 'f32[16,1]{1,0:T(8,128)}', space=vmem, size = 0x2000, scoped, tag = 'scratch operand']
  #allocation6 [shape = 'f32[1,1,128]{2,1,0:T(1,128)}', space=vmem, size = 0x200, scoped, tag = 'scratch operand']
  #allocation7 [shape = 'f32[1,1,128]{2,1,0:T(1,128)}', space=vmem, size = 0x200, scoped, tag = 'scratch operand']
  #allocation8 [shape = 'f32[1,1,128]{2,1,0:T(1,128)}', space=vmem, size = 0x200, scoped, tag = 'scratch operand']
  #allocation9 [shape = 'f32[1,1,128]{2,1,0:T(1,128)}', space=vmem, size = 0x200, scoped, tag = 'scratch operand']
  %s0 = inlined_call_operand.vmem [shape: bf16[16,256], index: 0, kind: input, shape index: {}]
  %s1 = inlined_call_operand.vmem [shape: bf16[128,256], index: 1, kind: input, shape index: {}]
  %s2 = inlined_call_operand.hbm [shape: f32[1,1], index: 2, kind: output, shape index: {0}]
  %s3 = inlined_call_operand.hbm [shape: f32[1,1], index: 3, kind: output, shape index: {1}]
  %4 = xla_tuple %s2, %s3
  %s5 = sld [smem:[#allocation0]]
  $region46: #{infonce_loss_forward.6} parent=0
    _
  %s7 = ssub.s32 1, %s5
  %s8 = scalar_select 0, %s7, %s5
  $region1: #{infonce_loss_forward.6} parent=0
    #allocation10 [shape = 'u8[512]{0}', space=vmem, size = 0x400, scoped, tag = 'output window, operand 0, single buffered']
    #allocation11 [shape = 's32[1]{0}', space=sflag, size = 0x4, scoped, tag = 'scoped memory for infonce_loss_forward.6']
    #allocation12 [shape = 'u8[512]{0}', space=vmem, size = 0x400, scoped, tag = 'output window, operand 1, single buffered']
    #allocation13 [shape = 's32[1]{0}', space=sflag, size = 0x4, scoped, tag = 'scoped memory for infonce_loss_forward.6']
    %9 = vsyncpa [#allocation11], 0
    %10 = vsyncpa [#allocation13], 0
    // Predicated region
    $region2: #{infonce_loss_forward.6} parent=1 // pred_check
      _
    $region3: #{infonce_loss_forward.6} parent=1 // pred_check_branch
      %12 = sbr.rel (0) target = $region5
    $region4: #{infonce_loss_forward.6} parent=1 // pred_region
      _
    $region5: #{infonce_loss_forward.6} parent=1 // pred_fallthru
      _
    // Predicated region
    $region6: #{infonce_loss_forward.6} parent=1 // pred_check
      _
    $region7: #{infonce_loss_forward.6} parent=1 // pred_check_branch
      %14 = sbr.rel (0) target = $region9
    $region8: #{infonce_loss_forward.6} parent=1 // pred_region
      _
    $region9: #{infonce_loss_forward.6} parent=1 // pred_fallthru
      _
    %p15 = scmp.eq.s32.totalorder 0, 0
    %p16 = scmp.eq.s32.totalorder 0, 0
    %p17 = pnand %p15, %p16
    %p18 = pneg %p17
    // Predicated region
    $region10: #{infonce_loss_forward.6} parent=1 // pred_check
      _
    $region11: #{infonce_loss_forward.6} parent=1 // pred_check_branch
      %20 = sbr.rel (%p17) target = $region13
    $region12: #{infonce_loss_forward.6} parent=1 // pred_region
      %vm21 = vcmask 0
      %22 = vst.msk [vmem:[#allocation10] sm:$0x1] %vm21, 0.0
      %23 = vst.msk [vmem:[#allocation12] sm:$0x1] %vm21, 0.0
    $region13: #{infonce_loss_forward.6} parent=1 // pred_fallthru
      _
    // Predicated region
    $region14: #{infonce_loss_forward.6} parent=1 // pred_check
      %p24 = pneg %p16
    $region15: #{infonce_loss_forward.6} parent=1 // pred_check_branch
      %26 = sbr.rel (%p24) target = $region17
    $region16: #{infonce_loss_forward.6} parent=1 // pred_region
      %vm27 = vcmask 7168
      %28 = vst.msk [vmem:[#allocation2] sm:$0xff] %vm27, -1e+30
      %29 = vst.msk [vmem:[#allocation2 + $0x8] sm:$0xff] %vm27, -1e+30
      %30 = vst.msk [vmem:[#allocation3] sm:$0xff] %vm27, 0.0
      %31 = vst.msk [vmem:[#allocation3 + $0x8] sm:$0xff] %vm27, 0.0
      %32 = vst.msk [vmem:[#allocation4] sm:$0xff] %vm27, 0.0
      %33 = vst.msk [vmem:[#allocation4 + $0x8] sm:$0xff] %vm27, 0.0
      %34 = vst.msk [vmem:[#allocation5] sm:$0xff] %vm27, 0.0
      %35 = vst.msk [vmem:[#allocation5 + $0x8] sm:$0xff] %vm27, 0.0
    $region17: #{infonce_loss_forward.6} parent=1 // pred_fallthru
      _
    // Predicated region
    $region18: #{infonce_loss_forward.6} parent=1 // pred_check
      %p36 = pneg %p15
    $region19: #{infonce_loss_forward.6} parent=1 // pred_check_branch
      %38 = sbr.rel (%p36) target = $region21
    $region20: #{infonce_loss_forward.6} parent=1 // pred_region
      %39 = vst [vmem:[#allocation6] sm:$0x1] -1e+30
      %40 = vst [vmem:[#allocation7] sm:$0x1] 0.0
      %41 = vst [vmem:[#allocation8] sm:$0x1] 0.0
      %42 = vst [vmem:[#allocation9] sm:$0x1] 0.0
    $region21: #{infonce_loss_forward.6} parent=1 // pred_fallthru
      _
    %v43 = vld [vmem:[%s0] sm:$0xff]
    %v44 = vld [vmem:[%s0 + $0x8] sm:$0xff]
    %v45 = vld [vmem:[%s1] sm:$0xff]
    %v46 = vld [vmem:[%s1 + $0x8] sm:$0xff]
    %v47 = vld [vmem:[%s1 + $0x10] sm:$0xff]
    %v48 = vld [vmem:[%s1 + $0x18] sm:$0xff]
    %v49 = vld [vmem:[%s1 + $0x20] sm:$0xff]
    %v50 = vld [vmem:[%s1 + $0x28] sm:$0xff]
    %v51 = vld [vmem:[%s1 + $0x30] sm:$0xff]
    %v52 = vld [vmem:[%s1 + $0x38] sm:$0xff]
    %v53 = vld [vmem:[%s1 + $0x40] sm:$0xff]
    %v54 = vld [vmem:[%s1 + $0x48] sm:$0xff]
    %v55 = vld [vmem:[%s1 + $0x50] sm:$0xff]
    %v56 = vld [vmem:[%s1 + $0x58] sm:$0xff]
    %v57 = vld [vmem:[%s1 + $0x60] sm:$0xff]
    %v58 = vld [vmem:[%s1 + $0x68] sm:$0xff]
    %v59 = vld [vmem:[%s1 + $0x70] sm:$0xff]
    %v60 = vld [vmem:[%s1 + $0x78] sm:$0xff]
    %v63 = vunpack.c.l.b16 %v43
    %v64 = vunpack.c.h.b16 %v43
    %v65 = vunpack.c.l.b16 %v44
    %v66 = vunpack.c.h.b16 %v44
    %v67 = vpack.c.b16 %v65, %v63
    %v68 = vpack.c.b16 %v66, %v64
    %v87 = vunpack.c.l.b16 %v45
    %v88 = vunpack.c.h.b16 %v45
    %v89 = vunpack.c.l.b16 %v46
    %v90 = vunpack.c.h.b16 %v46
    %v91 = vunpack.c.l.b16 %v47
    %v92 = vunpack.c.h.b16 %v47
    %v93 = vunpack.c.l.b16 %v48
    %v94 = vunpack.c.h.b16 %v48
    %v95 = vunpack.c.l.b16 %v49
    %v96 = vunpack.c.h.b16 %v49
    %v97 = vunpack.c.l.b16 %v50
    %v98 = vunpack.c.h.b16 %v50
    %v99 = vunpack.c.l.b16 %v51
    %v100 = vunpack.c.h.b16 %v51
    %v101 = vunpack.c.l.b16 %v52
    %v102 = vunpack.c.h.b16 %v52
    %v103 = vunpack.c.l.b16 %v53
    %v104 = vunpack.c.h.b16 %v53
    %v105 = vunpack.c.l.b16 %v54
    %v106 = vunpack.c.h.b16 %v54
    %v107 = vunpack.c.l.b16 %v55
    %v108 = vunpack.c.h.b16 %v55
    %v109 = vunpack.c.l.b16 %v56
    %v110 = vunpack.c.h.b16 %v56
    %v111 = vunpack.c.l.b16 %v57
    %v112 = vunpack.c.h.b16 %v57
    %v113 = vunpack.c.l.b16 %v58
    %v114 = vunpack.c.h.b16 %v58
    %v115 = vunpack.c.l.b16 %v59
    %v116 = vunpack.c.h.b16 %v59
    %v117 = vunpack.c.l.b16 %v60
    %v118 = vunpack.c.h.b16 %v60
    %v119 = vpack.c.b16 %v89, %v87
    %v120 = vpack.c.b16 %v90, %v88
    %v121 = vpack.c.b16 %v93, %v91
    %v122 = vpack.c.b16 %v94, %v92
    %v123 = vpack.c.b16 %v97, %v95
    %v124 = vpack.c.b16 %v98, %v96
    %v125 = vpack.c.b16 %v101, %v99
    %v126 = vpack.c.b16 %v102, %v100
    %v127 = vpack.c.b16 %v105, %v103
    %v128 = vpack.c.b16 %v106, %v104
    %v129 = vpack.c.b16 %v109, %v107
    %v130 = vpack.c.b16 %v110, %v108
    %v131 = vpack.c.b16 %v113, %v111
    %v132 = vpack.c.b16 %v114, %v112
    %v133 = vpack.c.b16 %v117, %v115
    %v134 = vpack.c.b16 %v118, %v116
    %151 = vmatpush.bf16.xpose.msra.mxu0 %v133
    %152 = vmatpush.bf16.xpose.msra.mxu0 %v131
    %153 = vmatpush.bf16.xpose.msra.mxu0 %v129
    %154 = vmatpush.bf16.xpose.msra.mxu0 %v127
    %155 = vmatpush.bf16.xpose.msra.mxu0 %v125
    %156 = vmatpush.bf16.xpose.msra.mxu0 %v123
    %157 = vmatpush.bf16.xpose.msra.mxu0 %v121
    %158 = vmatpush.bf16.xpose.msra.mxu0 %v119
    %159 = vmatmul.bf16.gmra.mxu0 %v67
    %v160 = vpop.f32.mrf.mxu0
    %v161 = vadd.f32 0.0, %v160
    %v162 = vpop.f32.mrf.mxu0
    %v163 = vadd.f32 0.0, %v162
    %164 = vdwg.mxu0
    %165 = vmatpush.bf16.xpose.msra.mxu0 %v134
    %166 = vmatpush.bf16.xpose.msra.mxu0 %v132
    %167 = vmatpush.bf16.xpose.msra.mxu0 %v130
    %168 = vmatpush.bf16.xpose.msra.mxu0 %v128
    %169 = vmatpush.bf16.xpose.msra.mxu0 %v126
    %170 = vmatpush.bf16.xpose.msra.mxu0 %v124
    %171 = vmatpush.bf16.xpose.msra.mxu0 %v122
    %172 = vmatpush.bf16.xpose.msra.mxu0 %v120
    %173 = vmatmul.bf16.gmra.mxu0 %v68
    %v174 = vpop.f32.mrf.mxu0
    %v175 = vadd.f32 %v161, %v174
    %v176 = vpop.f32.mrf.mxu0
    %v177 = vadd.f32 %v163, %v176
    %178 = vdwg.mxu0
    %v179 = vlaneseq
    %v180 = vshrl.u32 %v179, 7
    %v181 = vadd.s32 %v180, 8
    %s182 = smul.u32 0, 16
    %v183 = vstv %s182
    %v184 = vadd.s32 %v180, %v183
    %v185 = vadd.s32 %v181, %v183
    %v186 = vlaneseq
    %v187 = vand.u32 %v186, 127
    %s188 = smul.u32 0, 128
    %v189 = vstv %s188
    %v190 = vadd.s32 %v187, %v189
    %vm191 = vcmp.eq.s32.totalorder %v184, %v190
    %vm192 = vcmp.eq.s32.totalorder %v185, %v190
    %v193 = vsel %vm191, %v175, 0.0
    %v194 = vsel %vm192, %v177, 0.0
    %vm195 = vcmp.lt.s32.totalorder %v190, 16
    %v196 = vsel %vm195, 1, 0
    %vm197 = vcmp.eq.s32.totalorder %v196, 1
    %v198 = vsel %vm197, %v175, -1e+30
    %v199 = vsel %vm197, %v177, -1e+30
    %v200 = vld [vmem:[#allocation2] sm:$0xff]
    %v201 = vld [vmem:[#allocation2 + $0x8] sm:$0xff]
    %202 = vmax.xlane.f32.xlu0 %v198
    %v203 = vpop.xlane.xlu0 %202
    %204 = vmax.xlane.f32.xlu0 %v199
    %v205 = vpop.xlane.xlu0 %204
    %v206 = vmax.f32 %v200, %v203
    %v207 = vmax.f32 %v201, %v205
    %v208 = vsub.f32 %v200, %v206
    %v209 = vsub.f32 %v201, %v207
    %v210 = vmul.f32 %v208, 1.442695
    %v211 = vpow.pop %v210
    %v212 = vmul.f32 %v209, 1.442695
    %v213 = vpow.pop %v212
    %v214 = vld [vmem:[#allocation3] sm:$0xff]
    %v215 = vld [vmem:[#allocation3 + $0x8] sm:$0xff]
    %v216 = vmul.f32 %v211, %v214
    %v217 = vmul.f32 %v213, %v215
    %219 = vset.pattern.permute.xlu0 0
    %220 = vperm.xlu0 %219, %v206
    %v221 = vpop.permute.xlu0 %220
    %224 = vset.pattern.permute.xlu0 0
    %225 = vperm.xlu0 %224, %v207
    %v226 = vpop.permute.xlu0 %225
    %v228 = vsub.f32 %v198, %v221
    %v229 = vsub.f32 %v199, %v226
    %v230 = vmul.f32 %v228, 1.442695
    %v231 = vpow.pop %v230
    %v232 = vmul.f32 %v229, 1.442695
    %v233 = vpow.pop %v232
    %234 = vadd.xlane.f32.xlu0 %v231
    %v235 = vpop.xlane.xlu0 %234
    %236 = vadd.xlane.f32.xlu0 %v233
    %v237 = vpop.xlane.xlu0 %236
    %v238 = vadd.f32 %v216, %v235
    %v239 = vadd.f32 %v217, %v237
    %vm240 = vcmask 7168
    %241 = vst.msk [vmem:[#allocation3] sm:$0xff] %vm240, %v238
    %242 = vst.msk [vmem:[#allocation3 + $0x8] sm:$0xff] %vm240, %v239
    %243 = vst.msk [vmem:[#allocation2] sm:$0xff] %vm240, %v206
    %244 = vst.msk [vmem:[#allocation2 + $0x8] sm:$0xff] %vm240, %v207
    %v245 = vld [vmem:[#allocation5] sm:$0xff]
    %v246 = vld [vmem:[#allocation5 + $0x8] sm:$0xff]
    %247 = vadd.xlane.f32.xlu0 %v193
    %v248 = vpop.xlane.xlu0 %247
    %249 = vadd.xlane.f32.xlu0 %v194
    %v250 = vpop.xlane.xlu0 %249
    %v251 = vadd.f32 %v245, %v248
    %v252 = vadd.f32 %v246, %v250
    %253 = vst.msk [vmem:[#allocation5] sm:$0xff] %vm240, %v251
    %254 = vst.msk [vmem:[#allocation5 + $0x8] sm:$0xff] %vm240, %v252
    %v255 = vsel %vm197, %v175, 0.0
    %v256 = vsel %vm197, %v177, 0.0
    %v257 = vld [vmem:[#allocation4] sm:$0xff]
    %v258 = vld [vmem:[#allocation4 + $0x8] sm:$0xff]
    %259 = vadd.xlane.f32.xlu0 %v255
    %v260 = vpop.xlane.xlu0 %259
    %261 = vadd.xlane.f32.xlu0 %v256
    %v262 = vpop.xlane.xlu0 %261
    %v263 = vadd.f32 %v257, %v260
    %v264 = vadd.f32 %v258, %v262
    %265 = vst.msk [vmem:[#allocation4] sm:$0xff] %vm240, %v263
    %266 = vst.msk [vmem:[#allocation4 + $0x8] sm:$0xff] %vm240, %v264
    %v267 = vld [vmem:[#allocation6] sm:$0x1]
    %v268 = vmax.f32 %v175, %v177
    %v269 = vrot.slane %v268, 4
    %v270 = vmax.f32 %v268, %v269
    %v271 = vrot.slane %v270, 2
    %v272 = vmax.f32 %v270, %v271
    %v273 = vrot.slane %v272, 1
    %v274 = vmax.f32 %v272, %v273
    %v275 = vmax.f32 %v267, %v274
    %v276 = vsub.f32 %v267, %v275
    %v277 = vmul.f32 %v276, 1.442695
    %v278 = vpow.pop %v277
    %v279 = vld [vmem:[#allocation7] sm:$0x1]
    %v280 = vmul.f32 %v278, %v279
    %v282 = vperm.slane %v275, 0
    %v284 = vsub.f32 %v175, %v282
    %v285 = vsub.f32 %v177, %v282
    %v286 = vmul.f32 %v284, 1.442695
    %v287 = vpow.pop %v286
    %v288 = vmul.f32 %v285, 1.442695
    %v289 = vpow.pop %v288
    %v290 = vadd.f32 %v287, %v289
    %v291 = vrot.slane %v290, 4
    %v292 = vadd.f32 %v290, %v291
    %v293 = vrot.slane %v292, 2
    %v294 = vadd.f32 %v292, %v293
    %v295 = vrot.slane %v294, 1
    %v296 = vadd.f32 %v294, %v295
    %v297 = vadd.f32 %v280, %v296
    %298 = vst [vmem:[#allocation7] sm:$0x1] %v297
    %299 = vst [vmem:[#allocation6] sm:$0x1] %v275
    %v300 = vld [vmem:[#allocation9] sm:$0x1]
    %v301 = vadd.f32 %v193, %v194
    %v302 = vrot.slane %v301, 4
    %v303 = vadd.f32 %v301, %v302
    %v304 = vrot.slane %v303, 2
    %v305 = vadd.f32 %v303, %v304
    %v306 = vrot.slane %v305, 1
    %v307 = vadd.f32 %v305, %v306
    %v308 = vadd.f32 %v300, %v307
    %309 = vst [vmem:[#allocation9] sm:$0x1] %v308
    %v310 = vld [vmem:[#allocation8] sm:$0x1]
    %v311 = vadd.f32 %v175, %v177
    %v312 = vrot.slane %v311, 4
    %v313 = vadd.f32 %v311, %v312
    %v314 = vrot.slane %v313, 2
    %v315 = vadd.f32 %v313, %v314
    %v316 = vrot.slane %v315, 1
    %v317 = vadd.f32 %v315, %v316
    %v318 = vadd.f32 %v310, %v317
    %319 = vst [vmem:[#allocation8] sm:$0x1] %v318
    // Predicated region
    $region22: #{infonce_loss_forward.6} parent=1 // pred_check
      %p320 = pneg %p16
    $region23: #{infonce_loss_forward.6} parent=1 // pred_check_branch
      %322 = sbr.rel (%p320) target = $region25
    $region24: #{infonce_loss_forward.6} parent=1 // pred_region
      %v323 = vld [vmem:[#allocation2] sm:$0xff]
      %v324 = vld [vmem:[#allocation2 + $0x8] sm:$0xff]
      %v325 = vld [vmem:[#allocation3] sm:$0xff]
      %v326 = vld [vmem:[#allocation3 + $0x8] sm:$0xff]
      %v327 = vlog2.pop %v325
      %v328 = vmul.f32 %v327, 0.6931472
      %v329 = vlog2.pop %v326
      %v330 = vmul.f32 %v329, 0.6931472
      %v331 = vadd.f32 %v323, %v328
      %v332 = vadd.f32 %v324, %v330
      %v333 = vld [vmem:[#allocation5] sm:$0xff]
      %v334 = vld [vmem:[#allocation5 + $0x8] sm:$0xff]
      %v335 = vmul.f32 %v333, 0.9
      %v336 = vmul.f32 %v334, 0.9
      %v337 = vsub.f32 %v331, %v335
      %v338 = vsub.f32 %v332, %v336
      %v339 = vld [vmem:[#allocation4] sm:$0xff]
      %v340 = vld [vmem:[#allocation4 + $0x8] sm:$0xff]
      %v341 = vmul.f32 %v339, 0.00625
      %v342 = vmul.f32 %v340, 0.00625
      %v343 = vsub.f32 %v337, %v341
      %v344 = vsub.f32 %v338, %v342
      %v345 = vld [vmem:[#allocation10] sm:$0x1]
      %v346 = vsel %vm240, %v343, 0.0
      %v347 = vsel %vm240, %v344, 0.0
      %v348 = vadd.f32 %v346, %v347
      %v349 = vrot.slane %v348, 4
      %v350 = vadd.f32 %v348, %v349
      %v351 = vrot.slane %v350, 2
      %v352 = vadd.f32 %v350, %v351
      %v353 = vrot.slane %v352, 1
      %v354 = vadd.f32 %v352, %v353
      %v355 = vadd.f32 %v345, %v354
      %vm356 = vcmask 0
      %357 = vst.msk [vmem:[#allocation10] sm:$0x1] %vm356, %v355
    $region25: #{infonce_loss_forward.6} parent=1 // pred_fallthru
      _
    // Predicated region
    $region26: #{infonce_loss_forward.6} parent=1 // pred_check
      %p358 = pneg %p15
    $region27: #{infonce_loss_forward.6} parent=1 // pred_check_branch
      %360 = sbr.rel (%p358) target = $region29
    $region28: #{infonce_loss_forward.6} parent=1 // pred_region
      %v361 = vld [vmem:[#allocation6] sm:$0x1]
      %v362 = vld [vmem:[#allocation7] sm:$0x1]
      %v363 = vlog2.pop %v362
      %v364 = vmul.f32 %v363, 0.6931472
      %v365 = vadd.f32 %v361, %v364
      %v366 = vld [vmem:[#allocation9] sm:$0x1]
      %v367 = vmul.f32 %v366, 0.9
      %v368 = vsub.f32 %v365, %v367
      %v369 = vld [vmem:[#allocation8] sm:$0x1]
      %v370 = vmul.f32 %v369, 0.00625
      %v371 = vsub.f32 %v368, %v370
      %v372 = vsel %vm195, %v371, 0.0
      %v373 = vld [vmem:[#allocation12] sm:$0x1]
      %vm374 = vcmask 1040384
      %v375 = vsel %vm374, %v372, 0.0
      %376 = vadd.xlane.f32.xlu0 %v375
      %v377 = vpop.xlane.xlu0 %376
      %v378 = vadd.f32 %v373, %v377
      %vm379 = vcmask 0
      %380 = vst.msk [vmem:[#allocation12] sm:$0x1] %vm379, %v378
    $region29: #{infonce_loss_forward.6} parent=1 // pred_fallthru
      _
    // Predicated region
    $region30: #{infonce_loss_forward.6} parent=1 // pred_check
      _
    $region31: #{infonce_loss_forward.6} parent=1 // pred_check_branch
      %382 = sbr.rel (0) target = $region33
    $region32: #{infonce_loss_forward.6} parent=1 // pred_region
      %384 = vsyncadd [#allocation11], 0
      %s386 = sshll.u32 [#allocation10], 4
      %s387 = int_to_ptr.vmem [resolvable:$true] %s386
      %s388 = sshll.u32 %s2, 4
      %s389 = int_to_ptr.hbm [resolvable:$true] %s388
      %391 = dma.vmem_to_hbm [thread:$0]  %s387, 16, %s389, [#allocation11]
    $region33: #{infonce_loss_forward.6} parent=1 // pred_fallthru
      _
    // Predicated region
    $region34: #{infonce_loss_forward.6} parent=1 // pred_check
      _
    $region35: #{infonce_loss_forward.6} parent=1 // pred_check_branch
      %393 = sbr.rel (0) target = $region37
    $region36: #{infonce_loss_forward.6} parent=1 // pred_region
      %395 = vsyncadd [#allocation13], 0
      %s397 = sshll.u32 [#allocation12], 4
      %s398 = int_to_ptr.vmem [resolvable:$true] %s397
      %s399 = sshll.u32 %s3, 4
      %s400 = int_to_ptr.hbm [resolvable:$true] %s399
      %402 = dma.vmem_to_hbm [thread:$0]  %s398, 16, %s400, [#allocation13]
    $region37: #{infonce_loss_forward.6} parent=1 // pred_fallthru
      _
    // Predicated region
    $region38: #{infonce_loss_forward.6} parent=1 // pred_check
      _
    $region39: #{infonce_loss_forward.6} parent=1 // pred_check_branch
      %404 = sbr.rel (0) target = $region41
    $region40: #{infonce_loss_forward.6} parent=1 // pred_region
      %406 = dma.done [#allocation11], 16
    $region41: #{infonce_loss_forward.6} parent=1 // pred_fallthru
      _
    // Predicated region
    $region42: #{infonce_loss_forward.6} parent=1 // pred_check
      _
    $region43: #{infonce_loss_forward.6} parent=1 // pred_check_branch
      %408 = sbr.rel (0) target = $region45
    $region44: #{infonce_loss_forward.6} parent=1 // pred_region
      %410 = dma.done [#allocation13], 16
    $region45: #{infonce_loss_forward.6} parent=1 // pred_fallthru
      _
    %411 = vsyncpa [#allocation11], 1
    %412 = vsyncpa [#allocation13], 1

</llo_original>
